<compile_context>
chip_gen: v7x
topology: tpu7x:2x2x1
jax: 0.10.0
libtpu: 0.0.40
codegen_flags: <defaults>
</compile_context>

<pallas_src>
import jax
import jax.numpy as jnp
from jax.experimental import pallas as pl
from jax.experimental.pallas import tpu as pltpu

LANE, SUB = 128, 8
VMEM_LIMIT = 32 * 1024 * 1024      # explicit scoped-VMEM budget (v5e/v6e/v7x safe)


def _round_up(n, m):
    return ((n + m - 1) // m) * m


def _cdiv(a, b):
    return -(-a // b)


def _pad2(a, d0, d1):
    return jnp.pad(a, ((0, d0 - a.shape[0]), (0, d1 - a.shape[1])))


def _pad3(a, d0, d1, d2):
    return jnp.pad(a, ((0, d0 - a.shape[0]), (0, d1 - a.shape[1]),
                       (0, d2 - a.shape[2])))


def make_gru_kernel(hid_size):
    """Serial GRU recurrence only: one fused (Bp,HP)x(HP,3*GP) MXU push per
    step; every non-recurrent term is hoisted (ses/bias folds) or deferred."""

    def gru_kernel(gi_ref, whh_ref, ghn_ref, h0_ref, hseq_ref, h_scr):
        Tc = gi_ref.shape[0]
        GP = h_scr.shape[1]
        HP = whh_ref.shape[0]                  # carry-only contraction width

        # Hidden state persists in VMEM scratch across the time-chunk grid.
        @pl.when(pl.program_id(0) == 0)
        def _():
            h_scr[...] = h0_ref[...]

        lane = jax.lax.broadcasted_iota(jnp.int32, h_scr.shape, 1)
        carry_mask = lane < hid_size           # only the first H lanes recur

        def step(t, carry):
            h_full = h_scr[...]                # (Bp, GP): [carry | ses | 0pad]
            # Single fused r/z/n matmul over the carried lanes only; the ses
            # half + b_hh were precomputed outside the recurrence.
            gh = jnp.dot(h_full[:, :HP].astype(whh_ref.dtype), whh_ref[...],
                         preferred_element_type=jnp.float32)   # (Bp, 3*GP)
            gi = gi_ref[t]                     # (Bp, 3*GP), ses+bias folded in
            rz = jax.nn.sigmoid(gi[:, :2 * GP] + gh[:, :2 * GP])
            r = rz[:, :GP]
            z = rz[:, GP:]
            n = jnp.tanh(gi[:, 2 * GP:] + r * (gh[:, 2 * GP:] + ghn_ref[...]))
            h_new = (1.0 - z) * n + z * h_full
            hseq_ref[t] = h_new                # lane-dense (Bp, GP) store
            # carry first H lanes; ses half / zero pad stay untouched
            h_scr[...] = jnp.where(carry_mask, h_new, h_full)
            return carry

        # Trip count bounded by the time chunk -> safe full unroll.
        jax.lax.fori_loop(0, Tc, step, 0, unroll=True)

    return gru_kernel


def tail_kernel(h_ref, l3_ref, w2t_ref, b2_ref, wout_ref, out_ref):
    """Deferred, fully parallel tail: lin2 + lin3, max_out, out_embed.
    Grid = (time blocks, vocab tiles); both axes parallel."""
    tb, bp, gp = h_ref.shape
    ep2 = w2t_ref.shape[1]
    h = h_ref[...].reshape(tb * bp, gp)
    l3 = l3_ref[...].reshape(tb * bp, ep2)
    o = (jnp.dot(h.astype(w2t_ref.dtype), w2t_ref[...],
                 preferred_element_type=jnp.float32)
         + b2_ref[...] + l3)                    # (M, 2*EP), halves vreg-aligned
    ep = ep2 // 2
    mo = jnp.maximum(o[:, :ep], o[:, ep:])      # max_out: pure VPU select
    logits = jnp.dot(mo.astype(wout_ref.dtype), wout_ref[...],
                     preferred_element_type=jnp.float32)   # (M, TN) lane-dense
    out_ref[...] = logits.reshape(tb, bp, -1)


def decoder_forward(ses_encoding, x, params, *, matmul_dtype=jnp.float32,
                    rec_chunk=4):
    (in_embed, w_ih, b_ih, w_hh, b_hh,
     w1, b1, w2, b2, lin3_tab, w_out) = params
    B, T = x.shape
    V, E = in_embed.shape
    H = w1.shape[0]
    H2 = 2 * H
    f32 = jnp.float32

    Bp = _round_up(max(B, SUB), SUB)          # batch padded to full sublanes
    GP = _round_up(max(H2, LANE), LANE)       # per-gate lane width (2H padded)
    HP = min(_round_up(max(H, LANE), LANE), GP)  # carry-only contraction width
    EP = _round_up(max(E, LANE), LANE)        # max_out half width, padded
    Vp = _round_up(max(V, LANE), LANE)        # vocab padded to 128 lanes

    # ---- hoisted, non-recurrent precompute (plain XLA glue) ---------------
    ses2d = ses_encoding.reshape(B, -1).astype(f32)
    ses = jnp.tanh(ses2d @ w1.T.astype(f32) + b1.astype(f32))       # (B, H)

    # Token-dependent input projection, batched over all T steps.
    tok_emb = in_embed[x].astype(f32)                               # (B, T, E)
    gi = (tok_emb.reshape(B * T, E) @ w_ih.T.astype(f32)
          + b_ih.astype(f32)).reshape(B, T, 3 * H2)

    # Time-invariant ses-half contribution of the hidden matmul (+ b_hh):
    # r/z parts fold into gi; the n part stays separate (it is scaled by r).
    whh_t = w_hh.T.astype(f32)                                      # (2H, 6H)
    gh_ses = ses @ whh_t[H:H2] + b_hh.astype(f32)                   # (B, 6H)
    gi_r = gi[..., 0 * H2:1 * H2] + gh_ses[:, None, 0 * H2:1 * H2]
    gi_z = gi[..., 1 * H2:2 * H2] + gh_ses[:, None, 1 * H2:2 * H2]
    gi_n = gi[..., 2 * H2:3 * H2]
    ghn_const = _pad2(gh_ses[:, 2 * H2:3 * H2], Bp, GP)             # (Bp, GP)

    # One lane-dense (T1, Bp, 3*GP) gi stream, gate blocks at GP offsets.
    Tc = max(1, min(rec_chunk, T))
    n_tc = _cdiv(T, Tc)
    T1 = n_tc * Tc

    def pack_gate(g):
        return _pad3(jnp.transpose(g, (1, 0, 2)), T1, Bp, GP)

    gi_packed = jnp.concatenate(
        [pack_gate(gi_r), pack_gate(gi_z), pack_gate(gi_n)], axis=-1)

    # Fused carry-only hidden weights (HP, 3*GP); padded rows/lanes are zero
    # so padded state lanes contribute nothing.
    whh_carry = whh_t[:H]                                           # (H, 6H)
    whh_rzn = jnp.concatenate(
        [_pad2(whh_carry[:, g * H2:(g + 1) * H2], HP, GP) for g in range(3)],
        axis=1).astype(matmul_dtype)                                # (HP, 3*GP)

    # Initial full hidden = [ses ; ses] (carried half ; fixed half), padded.
    h0 = _pad2(jnp.concatenate([ses, ses], axis=1), Bp, GP)         # (Bp, GP)

    # ---- kernel 1: serial GRU recurrence, chunked over T for pipelining ---
    h_seq = pl.pallas_call(
        make_gru_kernel(H),
        out_shape=jax.ShapeDtypeStruct((T1, Bp, GP), f32),
        grid=(n_tc,),
        in_specs=[
            pl.BlockSpec((Tc, Bp, 3 * GP), lambda i: (i, 0, 0)),  # gi stream
            pl.BlockSpec((HP, 3 * GP), lambda i: (0, 0)),         # fused whh
            pl.BlockSpec((Bp, GP), lambda i: (0, 0)),             # ghn const
            pl.BlockSpec((Bp, GP), lambda i: (0, 0)),             # h0
        ],
        out_specs=pl.BlockSpec((Tc, Bp, GP), lambda i: (i, 0, 0)),
        scratch_shapes=[pltpu.VMEM((Bp, GP), f32)],
        compiler_params=pltpu.CompilerParams(
            dimension_semantics=("arbitrary",),        # truly sequential part
            vmem_limit_bytes=VMEM_LIMIT),
    )(gi_packed, whh_rzn, ghn_const, h0)

    # ---- kernel 2: deferred, fully parallel tail ---------------------------
    # Even/odd column split so each max_out half is a vreg-aligned EP slab:
    # half A holds PyTorch columns (2j), half B columns (2j+1).
    l3_vec = lin3_tab[x].astype(f32)                                # (B, T, 2E)

    def halves3(a):  # (B, T, 2E) -> (T, B, 2*EP)
        ev = jnp.pad(a[..., 0::2], ((0, 0), (0, 0), (0, EP - E)))
        od = jnp.pad(a[..., 1::2], ((0, 0), (0, 0), (0, EP - E)))
        return jnp.transpose(jnp.concatenate([ev, od], axis=-1), (1, 0, 2))

    TB = max(1, min(T, _cdiv(256, Bp)))     # fill the MXU rows (M = TB*Bp)
    n_tb = _cdiv(T, TB)
    T2 = n_tb * TB
    h_seq_p = _pad3(h_seq[:T], T2, Bp, GP)
    l3_p = _pad3(halves3(l3_vec), T2, Bp, 2 * EP)

    w2t = w2.T.astype(f32)                                          # (2H, 2E)
    w2t_p = jnp.concatenate(
        [_pad2(w2t[:, 0::2], GP, EP), _pad2(w2t[:, 1::2], GP, EP)],
        axis=1).astype(matmul_dtype)                                # (GP, 2*EP)
    b2_p = jnp.concatenate(
        [jnp.pad(b2[0::2].astype(f32), (0, EP - E)),
         jnp.pad(b2[1::2].astype(f32), (0, EP - E))]).reshape(1, 2 * EP)
    wout_p = _pad2(w_out.T.astype(f32), EP, Vp).astype(matmul_dtype)  # (EP, Vp)

    # Vocab tile (128-multiple dividing Vp): bounds wout + logits blocks so
    # production vocab fits v7x's 64 MiB VMEM and keeps writeback streaming.
    TN = next(c for c in (512, 384, 256, 128) if Vp % c == 0)
    n_vn = Vp // TN

    logits_p = pl.pallas_call(
        tail_kernel,
        out_shape=jax.ShapeDtypeStruct((T2, Bp, Vp), f32),
        grid=(n_tb, n_vn),
        in_specs=[
            pl.BlockSpec((TB, Bp, GP), lambda i, j: (i, 0, 0)),
            pl.BlockSpec((TB, Bp, 2 * EP), lambda i, j: (i, 0, 0)),
            pl.BlockSpec((GP, 2 * EP), lambda i, j: (0, 0)),
            pl.BlockSpec((1, 2 * EP), lambda i, j: (0, 0)),
            pl.BlockSpec((EP, TN), lambda i, j: (0, j)),
        ],
        out_specs=pl.BlockSpec((TB, Bp, TN), lambda i, j: (i, 0, j)),
        compiler_params=pltpu.CompilerParams(
            dimension_semantics=("parallel", "parallel"),  # v7x: 2 TCs share
            vmem_limit_bytes=VMEM_LIMIT),
    )(h_seq_p, l3_p, w2t_p, b2_p, wout_p)

    # Un-pad / relayout (tiny glue).
    return jnp.transpose(logits_p[:T, :B, :V], (1, 0, 2))           # (B, T, V)


def reference_forward(ses_encoding, x, params):
    """Pure-JAX re-implementation of the PyTorch semantics (for checking)."""
    (in_embed, w_ih, b_ih, w_hh, b_hh,
     w1, b1, w2, b2, lin3_tab, w_out) = params
    siz, seq_len = x.shape
    H = w1.shape[0]
    ses = jnp.tanh(ses_encoding @ w1.T + b1).reshape(1, siz, H)
    h = ses
    preds = []
    for i in range(seq_len):
        tok = x[:, i]
        xt = in_embed[tok]
        hcat = jnp.concatenate([h, ses], axis=2)[0]           # (B, 2H)
        gi = xt @ w_ih.T + b_ih
        gh = hcat @ w_hh.T + b_hh
        H2 = 2 * H
        r = jax.nn.sigmoid(gi[:, :H2] + gh[:, :H2])
        z = jax.nn.sigmoid(gi[:, H2:2 * H2] + gh[:, H2:2 * H2])
        n = jnp.tanh(gi[:, 2 * H2:] + r * gh[:, 2 * H2:])
        h_new = (1.0 - z) * n + z * hcat
        h = h_new[None, :, :H]
        o = h_new @ w2.T + b2 + lin3_tab[tok]                 # (B, 2E)
        o = o.reshape(siz, -1, 2).max(axis=2)                 # max_out
        preds.append(o @ w_out.T)
    return jnp.stack(preds, axis=1)                           # (B, T, V)


if __name__ == "__main__":
    key = jax.random.PRNGKey(0)
    V, E, H, SH = 64, 32, 32, 48          # vocab, emb, hid, ses_hid
    siz, seq_len = 2, 8                   # batch, sequence length
    ks = jax.random.split(key, 13)

    def rnd(k, shape, scale=0.1):
        return (scale * jax.random.normal(k, shape)).astype(jnp.float32)

    in_embed = rnd(ks[0], (V, E))                 # nn.Embedding(V, E)
    w_ih = rnd(ks[1], (3 * 2 * H, E))             # GRU weight_ih_l0
    b_ih = rnd(ks[2], (3 * 2 * H,))
    w_hh = rnd(ks[3], (3 * 2 * H, 2 * H))         # GRU weight_hh_l0
    b_hh = rnd(ks[4], (3 * 2 * H,))
    w1 = rnd(ks[5], (H, SH))                      # lin1
    b1 = rnd(ks[6], (H,))
    w2 = rnd(ks[7], (2 * E, 2 * H))               # lin2
    b2 = rnd(ks[8], (2 * E,))
    lin3_tab = rnd(ks[9], (V, 2 * E))             # lin3 (Embedding)
    w_out = rnd(ks[10], (V, E))                   # out_embed (no bias)
    params = (in_embed, w_ih, b_ih, w_hh, b_hh, w1, b1, w2, b2, lin3_tab, w_out)

    ses_encoding = rnd(ks[11], (1, siz, SH), scale=1.0)
    x = jax.random.randint(ks[12], (siz, seq_len), 0, V, dtype=jnp.int32)

    ref = reference_forward(ses_encoding, x, params)

    # f32 MXU path (exactness-checked).
    out = decoder_forward(ses_encoding, x, params, matmul_dtype=jnp.float32)
    out = jax.block_until_ready(out)
    assert out.shape == (siz, seq_len, V)
    assert jnp.allclose(out, ref, rtol=1e-2, atol=1e-2), \
        f"f32 max abs diff {jnp.max(jnp.abs(out - ref))}"

    # bf16 MXU-operand path (v6e/v7x bandwidth/VMEM optimization), looser tol.
    out_bf = decoder_forward(ses_encoding, x, params, matmul_dtype=jnp.bfloat16)
    out_bf = jax.block_until_ready(out_bf)
    assert jnp.allclose(out_bf, ref, rtol=1e-1, atol=1e-1), \
        f"bf16 max abs diff {jnp.max(jnp.abs(out_bf - ref))}"

    print("KERNEL_OK")
</pallas_src>

<mosaic_0001>
module attributes {stable_mosaic.version = 11 : i64} {
  func.func @gru_kernel(%arg0: i32, %arg1: memref<4x8x384xf32, #tpu.memory_space<vmem>>, %arg2: memref<128x384xf32, #tpu.memory_space<vmem>>, %arg3: memref<8x128xf32, #tpu.memory_space<vmem>>, %arg4: memref<8x128xf32, #tpu.memory_space<vmem>>, %arg5: memref<4x8x128xf32, #tpu.memory_space<vmem>>, %arg6: memref<8x128xf32, #tpu.memory_space<vmem>>) attributes {dimension_semantics = [#tpu.dimension_semantics<arbitrary>], iteration_bounds = array<i64: 2>, scalar_prefetch = 0 : i64, scratch_operands = 1 : i64, tpu.core_type = #tpu.core_type<tc>, window_params = [{transform_indices = @transform_0, window_bounds = array<i64: 4, 8, 384>}, {pipeline_mode = #tpu.pipeline_mode<synchronous>, transform_indices = @transform_1, window_bounds = array<i64: 128, 384>}, {pipeline_mode = #tpu.pipeline_mode<synchronous>, transform_indices = @transform_2, window_bounds = array<i64: 8, 128>}, {pipeline_mode = #tpu.pipeline_mode<synchronous>, transform_indices = @transform_3, window_bounds = array<i64: 8, 128>}, {transform_indices = @transform_4, window_bounds = array<i64: 4, 8, 128>}]} {
    %c0_i32 = arith.constant 0 : i32
    %0 = arith.cmpi eq, %arg0, %c0_i32 : i32
    %1 = arith.extui %0 : i1 to i32
    %c0_i32_0 = arith.constant 0 : i32
    %2 = arith.cmpi ne, %1, %c0_i32_0 : i32
    scf.if %2 {
      %c0_60 = arith.constant 0 : index
      %c0_61 = arith.constant 0 : index
      %142 = vector.load %arg4[%c0_60, %c0_61] : memref<8x128xf32, #tpu.memory_space<vmem>>, vector<8x128xf32>
      %c0_62 = arith.constant 0 : index
      %c0_63 = arith.constant 0 : index
      %143 = vector.load %arg6[%c0_62, %c0_63] : memref<8x128xf32, #tpu.memory_space<vmem>>, vector<8x128xf32>
      tpu.vector_store %arg6[%c0_62, %c0_63], %142 {strides = array<i32>} : memref<8x128xf32, #tpu.memory_space<vmem>>, vector<8x128xf32>,
    } else {
    }
    %3 = tpu.iota {dimensions = array<i32: 1>} : vector<8x128xi32>
    %c32_i32 = arith.constant 32 : i32
    %4 = vector.broadcast %c32_i32 : i32 to vector<8x128xi32>
    %5 = arith.cmpi slt, %3, %4 : vector<8x128xi32>
    %c0_i32_1 = arith.constant 0 : i32
    %c0 = arith.constant 0 : index
    %c0_2 = arith.constant 0 : index
    %6 = vector.load %arg6[%c0, %c0_2] : memref<8x128xf32, #tpu.memory_space<vmem>>, vector<8x128xf32>
    %c0_3 = arith.constant 0 : index
    %c0_4 = arith.constant 0 : index
    %7 = vector.load %arg2[%c0_3, %c0_4] : memref<128x384xf32, #tpu.memory_space<vmem>>, vector<128x384xf32>
    %cst = arith.constant dense<0.000000e+00> : vector<8x384xf32>
    %8 = tpu.matmul %6, %7, %cst {dimension_numbers = #tpu.dot_dimension_numbers<[1], [0], [0], [1], [0, 0, 1, 1], [], []>} : vector<8x128xf32>, vector<128x384xf32>, vector<8x384xf32> -> vector<8x384xf32>
    %9 = arith.index_cast %c0_i32_1 : i32 to index
    %c0_5 = arith.constant 0 : index
    %c0_6 = arith.constant 0 : index
    %10 = vector.load %arg1[%9, %c0_5, %c0_6] : memref<4x8x384xf32, #tpu.memory_space<vmem>>, vector<1x8x384xf32>
    %11 = vector.shape_cast %10 : vector<1x8x384xf32> to vector<8x384xf32>
    %12 = vector.extract_strided_slice %11 {offsets = [0, 0], sizes = [8, 256], strides = [1, 1]} : vector<8x384xf32> to vector<8x256xf32>
    %13 = vector.extract_strided_slice %8 {offsets = [0, 0], sizes = [8, 256], strides = [1, 1]} : vector<8x384xf32> to vector<8x256xf32>
    %14 = arith.addf %12, %13 : vector<8x256xf32>
    %15 = arith.negf %14 : vector<8x256xf32>
    %16 = math.exp %15 : vector<8x256xf32>
    %cst_7 = arith.constant 1.000000e+00 : f32
    %17 = vector.broadcast %cst_7 : f32 to vector<8x256xf32>
    %18 = arith.addf %17, %16 : vector<8x256xf32>
    %19 = arith.divf %17, %18 : vector<8x256xf32>
    %20 = vector.extract_strided_slice %19 {offsets = [0, 0], sizes = [8, 128], strides = [1, 1]} : vector<8x256xf32> to vector<8x128xf32>
    %21 = vector.extract_strided_slice %19 {offsets = [0, 128], sizes = [8, 128], strides = [1, 1]} : vector<8x256xf32> to vector<8x128xf32>
    %22 = vector.extract_strided_slice %11 {offsets = [0, 256], sizes = [8, 128], strides = [1, 1]} : vector<8x384xf32> to vector<8x128xf32>
    %23 = vector.extract_strided_slice %8 {offsets = [0, 256], sizes = [8, 128], strides = [1, 1]} : vector<8x384xf32> to vector<8x128xf32>
    %c0_8 = arith.constant 0 : index
    %c0_9 = arith.constant 0 : index
    %24 = vector.load %arg3[%c0_8, %c0_9] : memref<8x128xf32, #tpu.memory_space<vmem>>, vector<8x128xf32>
    %25 = arith.addf %23, %24 : vector<8x128xf32>
    %26 = arith.mulf %20, %25 : vector<8x128xf32>
    %27 = arith.addf %22, %26 : vector<8x128xf32>
    %28 = math.tanh %27 : vector<8x128xf32>
    %cst_10 = arith.constant 1.000000e+00 : f32
    %29 = vector.broadcast %cst_10 : f32 to vector<8x128xf32>
    %30 = arith.subf %29, %21 : vector<8x128xf32>
    %31 = arith.mulf %30, %28 : vector<8x128xf32>
    %32 = arith.mulf %21, %6 : vector<8x128xf32>
    %33 = arith.addf %31, %32 : vector<8x128xf32>
    %34 = arith.index_cast %c0_i32_1 : i32 to index
    %c0_11 = arith.constant 0 : index
    %c0_12 = arith.constant 0 : index
    %35 = vector.load %arg5[%34, %c0_11, %c0_12] : memref<4x8x128xf32, #tpu.memory_space<vmem>>, vector<1x8x128xf32>
    %36 = vector.shape_cast %35 : vector<1x8x128xf32> to vector<8x128xf32>
    %37 = vector.shape_cast %33 : vector<8x128xf32> to vector<1x8x128xf32>
    tpu.vector_store %arg5[%34, %c0_11, %c0_12], %37 {strides = array<i32>} : memref<4x8x128xf32, #tpu.memory_space<vmem>>, vector<1x8x128xf32>,
    %38 = arith.select %5, %33, %6 : vector<8x128xi1>, vector<8x128xf32>
    %c0_13 = arith.constant 0 : index
    %c0_14 = arith.constant 0 : index
    %39 = vector.load %arg6[%c0_13, %c0_14] : memref<8x128xf32, #tpu.memory_space<vmem>>, vector<8x128xf32>
    tpu.vector_store %arg6[%c0_13, %c0_14], %38 {strides = array<i32>} : memref<8x128xf32, #tpu.memory_space<vmem>>, vector<8x128xf32>,
    %c1_i32 = arith.constant 1 : i32
    %c0_15 = arith.constant 0 : index
    %c0_16 = arith.constant 0 : index
    %40 = vector.load %arg6[%c0_15, %c0_16] : memref<8x128xf32, #tpu.memory_space<vmem>>, vector<8x128xf32>
    %c0_17 = arith.constant 0 : index
    %c0_18 = arith.constant 0 : index
    %41 = vector.load %arg2[%c0_17, %c0_18] : memref<128x384xf32, #tpu.memory_space<vmem>>, vector<128x384xf32>
    %cst_19 = arith.constant dense<0.000000e+00> : vector<8x384xf32>
    %42 = tpu.matmul %40, %41, %cst_19 {dimension_numbers = #tpu.dot_dimension_numbers<[1], [0], [0], [1], [0, 0, 1, 1], [], []>} : vector<8x128xf32>, vector<128x384xf32>, vector<8x384xf32> -> vector<8x384xf32>
    %43 = arith.index_cast %c1_i32 : i32 to index
    %c0_20 = arith.constant 0 : index
    %c0_21 = arith.constant 0 : index
    %44 = vector.load %arg1[%43, %c0_20, %c0_21] : memref<4x8x384xf32, #tpu.memory_space<vmem>>, vector<1x8x384xf32>
    %45 = vector.shape_cast %44 : vector<1x8x384xf32> to vector<8x384xf32>
    %46 = vector.extract_strided_slice %45 {offsets = [0, 0], sizes = [8, 256], strides = [1, 1]} : vector<8x384xf32> to vector<8x256xf32>
    %47 = vector.extract_strided_slice %42 {offsets = [0, 0], sizes = [8, 256], strides = [1, 1]} : vector<8x384xf32> to vector<8x256xf32>
    %48 = arith.addf %46, %47 : vector<8x256xf32>
    %49 = arith.negf %48 : vector<8x256xf32>
    %50 = math.exp %49 : vector<8x256xf32>
    %cst_22 = arith.constant 1.000000e+00 : f32
    %51 = vector.broadcast %cst_22 : f32 to vector<8x256xf32>
    %52 = arith.addf %51, %50 : vector<8x256xf32>
    %53 = arith.divf %51, %52 : vector<8x256xf32>
    %54 = vector.extract_strided_slice %53 {offsets = [0, 0], sizes = [8, 128], strides = [1, 1]} : vector<8x256xf32> to vector<8x128xf32>
    %55 = vector.extract_strided_slice %53 {offsets = [0, 128], sizes = [8, 128], strides = [1, 1]} : vector<8x256xf32> to vector<8x128xf32>
    %56 = vector.extract_strided_slice %45 {offsets = [0, 256], sizes = [8, 128], strides = [1, 1]} : vector<8x384xf32> to vector<8x128xf32>
    %57 = vector.extract_strided_slice %42 {offsets = [0, 256], sizes = [8, 128], strides = [1, 1]} : vector<8x384xf32> to vector<8x128xf32>
    %c0_23 = arith.constant 0 : index
    %c0_24 = arith.constant 0 : index
    %58 = vector.load %arg3[%c0_23, %c0_24] : memref<8x128xf32, #tpu.memory_space<vmem>>, vector<8x128xf32>
    %59 = arith.addf %57, %58 : vector<8x128xf32>
    %60 = arith.mulf %54, %59 : vector<8x128xf32>
    %61 = arith.addf %56, %60 : vector<8x128xf32>
    %62 = math.tanh %61 : vector<8x128xf32>
    %cst_25 = arith.constant 1.000000e+00 : f32
    %63 = vector.broadcast %cst_25 : f32 to vector<8x128xf32>
    %64 = arith.subf %63, %55 : vector<8x128xf32>
    %65 = arith.mulf %64, %62 : vector<8x128xf32>
    %66 = arith.mulf %55, %40 : vector<8x128xf32>
    %67 = arith.addf %65, %66 : vector<8x128xf32>
    %68 = arith.index_cast %c1_i32 : i32 to index
    %c0_26 = arith.constant 0 : index
    %c0_27 = arith.constant 0 : index
    %69 = vector.load %arg5[%68, %c0_26, %c0_27] : memref<4x8x128xf32, #tpu.memory_space<vmem>>, vector<1x8x128xf32>
    %70 = vector.shape_cast %69 : vector<1x8x128xf32> to vector<8x128xf32>
    %71 = vector.shape_cast %67 : vector<8x128xf32> to vector<1x8x128xf32>
    tpu.vector_store %arg5[%68, %c0_26, %c0_27], %71 {strides = array<i32>} : memref<4x8x128xf32, #tpu.memory_space<vmem>>, vector<1x8x128xf32>,
    %72 = arith.select %5, %67, %40 : vector<8x128xi1>, vector<8x128xf32>
    %c0_28 = arith.constant 0 : index
    %c0_29 = arith.constant 0 : index
    %73 = vector.load %arg6[%c0_28, %c0_29] : memref<8x128xf32, #tpu.memory_space<vmem>>, vector<8x128xf32>
    tpu.vector_store %arg6[%c0_28, %c0_29], %72 {strides = array<i32>} : memref<8x128xf32, #tpu.memory_space<vmem>>, vector<8x128xf32>,
    %c2_i32 = arith.constant 2 : i32
    %c0_30 = arith.constant 0 : index
    %c0_31 = arith.constant 0 : index
    %74 = vector.load %arg6[%c0_30, %c0_31] : memref<8x128xf32, #tpu.memory_space<vmem>>, vector<8x128xf32>
    %c0_32 = arith.constant 0 : index
    %c0_33 = arith.constant 0 : index
    %75 = vector.load %arg2[%c0_32, %c0_33] : memref<128x384xf32, #tpu.memory_space<vmem>>, vector<128x384xf32>
    %cst_34 = arith.constant dense<0.000000e+00> : vector<8x384xf32>
    %76 = tpu.matmul %74, %75, %cst_34 {dimension_numbers = #tpu.dot_dimension_numbers<[1], [0], [0], [1], [0, 0, 1, 1], [], []>} : vector<8x128xf32>, vector<128x384xf32>, vector<8x384xf32> -> vector<8x384xf32>
    %77 = arith.index_cast %c2_i32 : i32 to index
    %c0_35 = arith.constant 0 : index
    %c0_36 = arith.constant 0 : index
    %78 = vector.load %arg1[%77, %c0_35, %c0_36] : memref<4x8x384xf32, #tpu.memory_space<vmem>>, vector<1x8x384xf32>
    %79 = vector.shape_cast %78 : vector<1x8x384xf32> to vector<8x384xf32>
    %80 = vector.extract_strided_slice %79 {offsets = [0, 0], sizes = [8, 256], strides = [1, 1]} : vector<8x384xf32> to vector<8x256xf32>
    %81 = vector.extract_strided_slice %76 {offsets = [0, 0], sizes = [8, 256], strides = [1, 1]} : vector<8x384xf32> to vector<8x256xf32>
    %82 = arith.addf %80, %81 : vector<8x256xf32>
    %83 = arith.negf %82 : vector<8x256xf32>
    %84 = math.exp %83 : vector<8x256xf32>
    %cst_37 = arith.constant 1.000000e+00 : f32
    %85 = vector.broadcast %cst_37 : f32 to vector<8x256xf32>
    %86 = arith.addf %85, %84 : vector<8x256xf32>
    %87 = arith.divf %85, %86 : vector<8x256xf32>
    %88 = vector.extract_strided_slice %87 {offsets = [0, 0], sizes = [8, 128], strides = [1, 1]} : vector<8x256xf32> to vector<8x128xf32>
    %89 = vector.extract_strided_slice %87 {offsets = [0, 128], sizes = [8, 128], strides = [1, 1]} : vector<8x256xf32> to vector<8x128xf32>
    %90 = vector.extract_strided_slice %79 {offsets = [0, 256], sizes = [8, 128], strides = [1, 1]} : vector<8x384xf32> to vector<8x128xf32>
    %91 = vector.extract_strided_slice %76 {offsets = [0, 256], sizes = [8, 128], strides = [1, 1]} : vector<8x384xf32> to vector<8x128xf32>
    %c0_38 = arith.constant 0 : index
    %c0_39 = arith.constant 0 : index
    %92 = vector.load %arg3[%c0_38, %c0_39] : memref<8x128xf32, #tpu.memory_space<vmem>>, vector<8x128xf32>
    %93 = arith.addf %91, %92 : vector<8x128xf32>
    %94 = arith.mulf %88, %93 : vector<8x128xf32>
    %95 = arith.addf %90, %94 : vector<8x128xf32>
    %96 = math.tanh %95 : vector<8x128xf32>
    %cst_40 = arith.constant 1.000000e+00 : f32
    %97 = vector.broadcast %cst_40 : f32 to vector<8x128xf32>
    %98 = arith.subf %97, %89 : vector<8x128xf32>
    %99 = arith.mulf %98, %96 : vector<8x128xf32>
    %100 = arith.mulf %89, %74 : vector<8x128xf32>
    %101 = arith.addf %99, %100 : vector<8x128xf32>
    %102 = arith.index_cast %c2_i32 : i32 to index
    %c0_41 = arith.constant 0 : index
    %c0_42 = arith.constant 0 : index
    %103 = vector.load %arg5[%102, %c0_41, %c0_42] : memref<4x8x128xf32, #tpu.memory_space<vmem>>, vector<1x8x128xf32>
    %104 = vector.shape_cast %103 : vector<1x8x128xf32> to vector<8x128xf32>
    %105 = vector.shape_cast %101 : vector<8x128xf32> to vector<1x8x128xf32>
    tpu.vector_store %arg5[%102, %c0_41, %c0_42], %105 {strides = array<i32>} : memref<4x8x128xf32, #tpu.memory_space<vmem>>, vector<1x8x128xf32>,
    %106 = arith.select %5, %101, %74 : vector<8x128xi1>, vector<8x128xf32>
    %c0_43 = arith.constant 0 : index
    %c0_44 = arith.constant 0 : index
    %107 = vector.load %arg6[%c0_43, %c0_44] : memref<8x128xf32, #tpu.memory_space<vmem>>, vector<8x128xf32>
    tpu.vector_store %arg6[%c0_43, %c0_44], %106 {strides = array<i32>} : memref<8x128xf32, #tpu.memory_space<vmem>>, vector<8x128xf32>,
    %c3_i32 = arith.constant 3 : i32
    %c0_45 = arith.constant 0 : index
    %c0_46 = arith.constant 0 : index
    %108 = vector.load %arg6[%c0_45, %c0_46] : memref<8x128xf32, #tpu.memory_space<vmem>>, vector<8x128xf32>
    %c0_47 = arith.constant 0 : index
    %c0_48 = arith.constant 0 : index
    %109 = vector.load %arg2[%c0_47, %c0_48] : memref<128x384xf32, #tpu.memory_space<vmem>>, vector<128x384xf32>
    %cst_49 = arith.constant dense<0.000000e+00> : vector<8x384xf32>
    %110 = tpu.matmul %108, %109, %cst_49 {dimension_numbers = #tpu.dot_dimension_numbers<[1], [0], [0], [1], [0, 0, 1, 1], [], []>} : vector<8x128xf32>, vector<128x384xf32>, vector<8x384xf32> -> vector<8x384xf32>
    %111 = arith.index_cast %c3_i32 : i32 to index
    %c0_50 = arith.constant 0 : index
    %c0_51 = arith.constant 0 : index
    %112 = vector.load %arg1[%111, %c0_50, %c0_51] : memref<4x8x384xf32, #tpu.memory_space<vmem>>, vector<1x8x384xf32>
    %113 = vector.shape_cast %112 : vector<1x8x384xf32> to vector<8x384xf32>
    %114 = vector.extract_strided_slice %113 {offsets = [0, 0], sizes = [8, 256], strides = [1, 1]} : vector<8x384xf32> to vector<8x256xf32>
    %115 = vector.extract_strided_slice %110 {offsets = [0, 0], sizes = [8, 256], strides = [1, 1]} : vector<8x384xf32> to vector<8x256xf32>
    %116 = arith.addf %114, %115 : vector<8x256xf32>
    %117 = arith.negf %116 : vector<8x256xf32>
    %118 = math.exp %117 : vector<8x256xf32>
    %cst_52 = arith.constant 1.000000e+00 : f32
    %119 = vector.broadcast %cst_52 : f32 to vector<8x256xf32>
    %120 = arith.addf %119, %118 : vector<8x256xf32>
    %121 = arith.divf %119, %120 : vector<8x256xf32>
    %122 = vector.extract_strided_slice %121 {offsets = [0, 0], sizes = [8, 128], strides = [1, 1]} : vector<8x256xf32> to vector<8x128xf32>
    %123 = vector.extract_strided_slice %121 {offsets = [0, 128], sizes = [8, 128], strides = [1, 1]} : vector<8x256xf32> to vector<8x128xf32>
    %124 = vector.extract_strided_slice %113 {offsets = [0, 256], sizes = [8, 128], strides = [1, 1]} : vector<8x384xf32> to vector<8x128xf32>
    %125 = vector.extract_strided_slice %110 {offsets = [0, 256], sizes = [8, 128], strides = [1, 1]} : vector<8x384xf32> to vector<8x128xf32>
    %c0_53 = arith.constant 0 : index
    %c0_54 = arith.constant 0 : index
    %126 = vector.load %arg3[%c0_53, %c0_54] : memref<8x128xf32, #tpu.memory_space<vmem>>, vector<8x128xf32>
    %127 = arith.addf %125, %126 : vector<8x128xf32>
    %128 = arith.mulf %122, %127 : vector<8x128xf32>
    %129 = arith.addf %124, %128 : vector<8x128xf32>
    %130 = math.tanh %129 : vector<8x128xf32>
    %cst_55 = arith.constant 1.000000e+00 : f32
    %131 = vector.broadcast %cst_55 : f32 to vector<8x128xf32>
    %132 = arith.subf %131, %123 : vector<8x128xf32>
    %133 = arith.mulf %132, %130 : vector<8x128xf32>
    %134 = arith.mulf %123, %108 : vector<8x128xf32>
    %135 = arith.addf %133, %134 : vector<8x128xf32>
    %136 = arith.index_cast %c3_i32 : i32 to index
    %c0_56 = arith.constant 0 : index
    %c0_57 = arith.constant 0 : index
    %137 = vector.load %arg5[%136, %c0_56, %c0_57] : memref<4x8x128xf32, #tpu.memory_space<vmem>>, vector<1x8x128xf32>
    %138 = vector.shape_cast %137 : vector<1x8x128xf32> to vector<8x128xf32>
    %139 = vector.shape_cast %135 : vector<8x128xf32> to vector<1x8x128xf32>
    tpu.vector_store %arg5[%136, %c0_56, %c0_57], %139 {strides = array<i32>} : memref<4x8x128xf32, #tpu.memory_space<vmem>>, vector<1x8x128xf32>,
    %140 = arith.select %5, %135, %108 : vector<8x128xi1>, vector<8x128xf32>
    %c0_58 = arith.constant 0 : index
    %c0_59 = arith.constant 0 : index
    %141 = vector.load %arg6[%c0_58, %c0_59] : memref<8x128xf32, #tpu.memory_space<vmem>>, vector<8x128xf32>
    tpu.vector_store %arg6[%c0_58, %c0_59], %140 {strides = array<i32>} : memref<8x128xf32, #tpu.memory_space<vmem>>, vector<8x128xf32>,
    %c4_i32 = arith.constant 4 : i32
    return
  }
  func.func @transform_0(%arg0: i32) -> (i32, i32, i32) {
    %c0_i32 = arith.constant 0 : i32
    %c0_i32_0 = arith.constant 0 : i32
    %c0_i32_1 = arith.constant 0 : i32
    return %arg0, %c0_i32, %c0_i32_0 : i32, i32, i32
  }
  func.func @transform_1(%arg0: i32) -> (i32, i32) {
    %c0_i32 = arith.constant 0 : i32
    %c0_i32_0 = arith.constant 0 : i32
    %c0_i32_1 = arith.constant 0 : i32
    return %c0_i32, %c0_i32_0 : i32, i32
  }
  func.func @transform_2(%arg0: i32) -> (i32, i32) {
    %c0_i32 = arith.constant 0 : i32
    %c0_i32_0 = arith.constant 0 : i32
    %c0_i32_1 = arith.constant 0 : i32
    return %c0_i32, %c0_i32_0 : i32, i32
  }
  func.func @transform_3(%arg0: i32) -> (i32, i32) {
    %c0_i32 = arith.constant 0 : i32
    %c0_i32_0 = arith.constant 0 : i32
    %c0_i32_1 = arith.constant 0 : i32
    return %c0_i32, %c0_i32_0 : i32, i32
  }
  func.func @transform_4(%arg0: i32) -> (i32, i32, i32) {
    %c0_i32 = arith.constant 0 : i32
    %c0_i32_0 = arith.constant 0 : i32
    %c0_i32_1 = arith.constant 0 : i32
    return %arg0, %c0_i32, %c0_i32_0 : i32, i32, i32
  }
}

</mosaic_0001>

<llo_original>
// kernel: tpu_custom_call.1
$region0: #{tpu_custom_call.1}
  #allocation0 [shape = 'u32[]', space=smem, size = 0x4, offset = 0x4, fixed_abs, tag = 'smem constant byte address 0x4 - core index']
  #allocation1 [shape = 'u32[144,128]{1,0:T(1,128)}', space=vmem, size = 0x12000, scoped, tag = 'internal scratch']
  #allocation2 [shape = 'f32[8,128]{1,0:T(8,128)}', space=vmem, size = 0x1000, scoped, tag = 'scratch operand']
  %s0 = inlined_call_operand.hbm [shape: f32[8,8,384], index: 0, kind: input, shape index: {}]
  %s1 = inlined_call_operand.hbm [shape: f32[128,384], index: 1, kind: input, shape index: {}]
  %s2 = inlined_call_operand.hbm [shape: f32[8,128], index: 2, kind: input, shape index: {}]
  %s3 = inlined_call_operand.vmem [shape: f32[8,128], index: 3, kind: input, shape index: {}]
  %s4 = inlined_call_operand.hbm [shape: f32[8,8,128], index: 4, kind: output, shape index: {}]
  %s5 = sld [smem:[#allocation0]]
  $region65: #{tpu_custom_call.1} parent=0
    _
  %s7 = ssub.s32 1, %s5
  %s8 = scalar_select 0, %s7, %s5
  $region1: #{tpu_custom_call.1} parent=0
    #allocation3 [shape = 'u8[98304]{0}', space=vmem, size = 0x18000, scoped, tag = 'input window, operand 0']
    #allocation4 [shape = 's32[2]{0}', space=sflag, size = 0x8, scoped, tag = 'scoped memory for tpu_custom_call.1']
    #allocation5 [shape = 's32[2]{0}', space=sflag, size = 0x8, scoped, tag = 'scoped memory for tpu_custom_call.1']
    #allocation6 [shape = 'u8[196608]{0}', space=vmem, size = 0x30000, scoped, tag = 'input window, operand 1, single buffered']
    #allocation7 [shape = 's32[1]{0}', space=sflag, size = 0x4, scoped, tag = 'scoped memory for tpu_custom_call.1']
    #allocation8 [shape = 'u8[4096]{0}', space=vmem, size = 0x1000, scoped, tag = 'input window, operand 2, single buffered']
    #allocation9 [shape = 'u8[32768]{0}', space=vmem, size = 0x8000, scoped, tag = 'output window, operand 0']
    %9 = vsyncpa [#allocation4], 0
    %s10 = scalar_lea.sflag [#allocation4], 1
    %11 = vsyncpa %s10, 0
    %12 = vsyncpa [#allocation7], 0
    %13 = vsyncpa [#allocation5], 0
    %s14 = scalar_lea.sflag [#allocation5], 1
    %15 = vsyncpa %s14, 0
    loop: start=0, step=1, limit=4
    $region2: #{tpu_custom_call.1} parent=1 // loop_pre_header
      _
    $region3: #{tpu_custom_call.1} parent=1 // loop_header
      %s17 = sphi 0, %s21
      %p18 = scmp.ge.s32.totalorder %s17, 4
      %s27 = sphi 0, %s29
      %s30 = sphi 0, %s27
      %s31 = sphi 0, %s30
      %s47 = sphi 0, %s31
      %s51 = sphi 0, %s51
      %s53 = sphi 0, %s51
      %s54 = sphi 0, %s53
      %s68 = sphi 0, %s54
      %s72 = sphi 0, %s72
      %s74 = sphi 0, %s72
      %s75 = sphi 0, %s74
      %s89 = sphi 0, %s75
      %s93 = sphi 0, %s93
      %s95 = sphi 0, %s93
      %s96 = sphi 0, %s95
      %s110 = sphi 0, %s96
      %s116 = sphi 0, %s118
      %s119 = sphi 0, %s116
      %s120 = sphi 0, %s119
      %s136 = sphi 0, %s120
    $region4: #{tpu_custom_call.1} parent=1 // loop_header_branch
      %20 = sbr.rel (%p18) target = $region8
    $region5: #{tpu_custom_call.1} parent=1 // loop_body
      %s22 = ssub.s32 %s17, 1
      %s23 = ssub.s32 %s17, 2
      %s24 = sadd.s32 %s17, 1
      %s25 = ssub.s32 %s17, %s24
      %p26 = scmp.eq.s32.totalorder %s25, 0
      %s28 = sadd.s32 %s27, 1
      %s29 = scalar_select %p26, %s27, %s28
      %p32 = pneg %p26
      %p33 = scmp.eq.s32.totalorder %s17, 1
      %p34 = por %p32, %p33
      %p35 = scmp.ne.s32.totalorder %s27, %s30
      %p36 = scmp.eq.s32.totalorder %s17, 0
      %p37 = por %p35, %p36
      %p38 = scmp.ne.s32.totalorder %s27, %s30
      %p39 = scmp.eq.s32.totalorder %s22, 1
      %p40 = por %p38, %p39
      %p41 = scmp.ne.s32.totalorder %s30, %s31
      %p42 = scmp.eq.s32.totalorder %s22, 0
      %p43 = por %p41, %p42
      %p44 = scmp.ne.s32.totalorder %s30, %s31
      %p45 = scmp.eq.s32.totalorder %s23, 1
      %p46 = por %p44, %p45
      %p48 = scmp.ne.s32.totalorder %s31, %s47
      %p49 = scmp.eq.s32.totalorder %s23, 0
      %p50 = por %p48, %p49
      %s52 = sadd.s32 %s51, 1
      %p55 = scmp.eq.s32.totalorder %s17, 1
      %p56 = scmp.ne.s32.totalorder %s51, %s53
      %p57 = scmp.eq.s32.totalorder %s17, 0
      %p58 = por %p56, %p57
      %p59 = scmp.ne.s32.totalorder %s51, %s53
      %p60 = scmp.eq.s32.totalorder %s22, 1
      %p61 = por %p59, %p60
      %p62 = scmp.ne.s32.totalorder %s53, %s54
      %p63 = scmp.eq.s32.totalorder %s22, 0
      %p64 = por %p62, %p63
      %p65 = scmp.ne.s32.totalorder %s53, %s54
      %p66 = scmp.eq.s32.totalorder %s23, 1
      %p67 = por %p65, %p66
      %p69 = scmp.ne.s32.totalorder %s54, %s68
      %p70 = scmp.eq.s32.totalorder %s23, 0
      %p71 = por %p69, %p70
      %s73 = sadd.s32 %s72, 1
      %p76 = scmp.eq.s32.totalorder %s17, 1
      %p77 = scmp.ne.s32.totalorder %s72, %s74
      %p78 = scmp.eq.s32.totalorder %s17, 0
      %p79 = por %p77, %p78
      %p80 = scmp.ne.s32.totalorder %s72, %s74
      %p81 = scmp.eq.s32.totalorder %s22, 1
      %p82 = por %p80, %p81
      %p83 = scmp.ne.s32.totalorder %s74, %s75
      %p84 = scmp.eq.s32.totalorder %s22, 0
      %p85 = por %p83, %p84
      %p86 = scmp.ne.s32.totalorder %s74, %s75
      %p87 = scmp.eq.s32.totalorder %s23, 1
      %p88 = por %p86, %p87
      %p90 = scmp.ne.s32.totalorder %s75, %s89
      %p91 = scmp.eq.s32.totalorder %s23, 0
      %p92 = por %p90, %p91
      %s94 = sadd.s32 %s93, 1
      %p97 = scmp.eq.s32.totalorder %s17, 1
      %p98 = scmp.ne.s32.totalorder %s93, %s95
      %p99 = scmp.eq.s32.totalorder %s17, 0
      %p100 = por %p98, %p99
      %p101 = scmp.ne.s32.totalorder %s93, %s95
      %p102 = scmp.eq.s32.totalorder %s22, 1
      %p103 = por %p101, %p102
      %p104 = scmp.ne.s32.totalorder %s95, %s96
      %p105 = scmp.eq.s32.totalorder %s22, 0
      %p106 = por %p104, %p105
      %p107 = scmp.ne.s32.totalorder %s95, %s96
      %p108 = scmp.eq.s32.totalorder %s23, 1
      %p109 = por %p107, %p108
      %p111 = scmp.ne.s32.totalorder %s96, %s110
      %p112 = scmp.eq.s32.totalorder %s23, 0
      %p113 = por %p111, %p112
      %s114 = ssub.s32 %s17, %s24
      %p115 = scmp.eq.s32.totalorder %s114, 0
      %s117 = sadd.s32 %s116, 1
      %s118 = scalar_select %p115, %s116, %s117
      %p121 = pneg %p115
      %p122 = scmp.eq.s32.totalorder %s17, 1
      %p123 = por %p121, %p122
      %p124 = scmp.ne.s32.totalorder %s116, %s119
      %p125 = scmp.eq.s32.totalorder %s17, 0
      %p126 = por %p124, %p125
      %p127 = scmp.ne.s32.totalorder %s116, %s119
      %p128 = scmp.eq.s32.totalorder %s22, 1
      %p129 = por %p127, %p128
      %p130 = scmp.ne.s32.totalorder %s119, %s120
      %p131 = scmp.eq.s32.totalorder %s22, 0
      %p132 = por %p130, %p131
      %p133 = scmp.ne.s32.totalorder %s119, %s120
      %p134 = scmp.eq.s32.totalorder %s23, 1
      %p135 = por %p133, %p134
      %p137 = scmp.ne.s32.totalorder %s120, %s136
      %p138 = scmp.eq.s32.totalorder %s23, 0
      %p139 = por %p137, %p138
      %p140 = scmp.le.s32.totalorder 1, %s17
      %p141 = scmp.lt.s32.totalorder %s17, 3
      %p142 = pnand %p140, %p141
      %p143 = pneg %p142
      // Predicated region
      $region9: #{tpu_custom_call.1} parent=5 // pred_check
        _
      $region10: #{tpu_custom_call.1} parent=5 // pred_check_branch
        %145 = sbr.rel (%p142) target = $region12
      $region11: #{tpu_custom_call.1} parent=5 // pred_region
        %s146 = ssub.s32 %s17, 1
        // Predicated region
        $region13: #{tpu_custom_call.1} parent=11 // pred_check
          %p147 = pneg %p64
        $region14: #{tpu_custom_call.1} parent=11 // pred_check_branch
          %149 = sbr.rel (%p147) target = $region16
        $region15: #{tpu_custom_call.1} parent=11 // pred_region
          %s151 = ssub.s32 6144, 6144
          %152 = vsyncadd [#allocation7], %s151
          %s153 = sshll.u32 [#allocation6], 4
          %s154 = int_to_ptr.vmem [resolvable:$true] %s153
          %159 = dma.hbm_to_vmem [thread:$0]  %s1, 6144, %s154, [#allocation7], 384, 384, 24
        $region16: #{tpu_custom_call.1} parent=11 // pred_fallthru
          _
        // Predicated region
        $region17: #{tpu_custom_call.1} parent=11 // pred_check
          %p160 = pneg %p85
        $region18: #{tpu_custom_call.1} parent=11 // pred_check_branch
          %162 = sbr.rel (%p160) target = $region20
        $region19: #{tpu_custom_call.1} parent=11 // pred_region
          %s164 = ssub.s32 128, 128
          %165 = vsyncadd [#allocation7], %s164
          %s167 = sshll.u32 [#allocation8], 4
          %s168 = int_to_ptr.vmem [resolvable:$true] %s167
          %170 = dma.hbm_to_vmem [thread:$0]  %s2, 128, %s168, [#allocation7]
        $region20: #{tpu_custom_call.1} parent=11 // pred_fallthru
          _
        // Predicated region
        $region21: #{tpu_custom_call.1} parent=11 // pred_check
          %p171 = pneg %p106
        $region22: #{tpu_custom_call.1} parent=11 // pred_check_branch
          %173 = sbr.rel (%p171) target = $region24
        $region23: #{tpu_custom_call.1} parent=11 // pred_region
          _
        $region24: #{tpu_custom_call.1} parent=11 // pred_fallthru
          _
      $region12: #{tpu_custom_call.1} parent=5 // pred_fallthru
        _
      %p174 = scmp.lt.s32.totalorder %s17, 2
      // Predicated region
      $region25: #{tpu_custom_call.1} parent=5 // pred_check
        %p175 = pneg %p174
      $region26: #{tpu_custom_call.1} parent=5 // pred_check_branch
        %177 = sbr.rel (%p175) target = $region28
      $region27: #{tpu_custom_call.1} parent=5 // pred_region
        // Predicated region
        $region29: #{tpu_custom_call.1} parent=27 // pred_check
          %p178 = pneg %p37
        $region30: #{tpu_custom_call.1} parent=27 // pred_check_branch
          %180 = sbr.rel (%p178) target = $region32
        $region31: #{tpu_custom_call.1} parent=27 // pred_region
          %s181 = sand.u32 %s27, 1
          %s182 = scalar_lea.sflag [#allocation4], %s181
          %s183 = sand.u32 %s27, 1
          %s184 = smul.addr %s183, 96
          %s185 = scalar_lea.vmem [#allocation3], %s184
          %s186 = smul.u32 4, %s17
          %s188 = ssub.s32 1536, 1536
          %189 = vsyncadd %s182, %s188
          %s190 = smul.addr %s186, 3
          %s191 = smul.addr %s190, 128
          %s192 = scalar_lea.hbm %s0, %s191
          %s193 = sshll.u32 %s185, 4
          %s194 = int_to_ptr.vmem [resolvable:$true] %s193
          %199 = dma.hbm_to_vmem [thread:$0]  %s192, 1536, %s194, %s182, 384, 384, 24
        $region32: #{tpu_custom_call.1} parent=27 // pred_fallthru
          _
      $region28: #{tpu_custom_call.1} parent=5 // pred_fallthru
        _
      %p200 = scmp.le.s32.totalorder 1, %s17
      %p201 = scmp.lt.s32.totalorder %s17, 3
      %p202 = pnand %p200, %p201
      %p203 = pneg %p202
      // Predicated region
      $region33: #{tpu_custom_call.1} parent=5 // pred_check
        _
      $region34: #{tpu_custom_call.1} parent=5 // pred_check_branch
        %205 = sbr.rel (%p202) target = $region36
      $region35: #{tpu_custom_call.1} parent=5 // pred_region
        %s206 = ssub.s32 %s17, 1
        %s207 = sand.u32 %s30, 1
        %s208 = scalar_lea.sflag [#allocation4], %s207
        %s209 = sand.u32 %s30, 1
        %s210 = smul.addr %s209, 96
        %s211 = scalar_lea.vmem [#allocation3], %s210
        // Predicated region
        $region37: #{tpu_custom_call.1} parent=35 // pred_check
          %p212 = pneg %p43
        $region38: #{tpu_custom_call.1} parent=35 // pred_check_branch
          %214 = sbr.rel (%p212) target = $region40
        $region39: #{tpu_custom_call.1} parent=35 // pred_region
          %215 = dma.done %s208, 1536
        $region40: #{tpu_custom_call.1} parent=35 // pred_fallthru
          _
        // Predicated region
        $region41: #{tpu_custom_call.1} parent=35 // pred_check
          %p216 = pneg %p64
        $region42: #{tpu_custom_call.1} parent=35 // pred_check_branch
          %218 = sbr.rel (%p216) target = $region44
        $region43: #{tpu_custom_call.1} parent=35 // pred_region
          %219 = dma.done [#allocation7], 6144
        $region44: #{tpu_custom_call.1} parent=35 // pred_fallthru
          _
        // Predicated region
        $region45: #{tpu_custom_call.1} parent=35 // pred_check
          %p220 = pneg %p85
        $region46: #{tpu_custom_call.1} parent=35 // pred_check_branch
          %222 = sbr.rel (%p220) target = $region48
        $region47: #{tpu_custom_call.1} parent=35 // pred_region
          %223 = dma.done [#allocation7], 128
        $region48: #{tpu_custom_call.1} parent=35 // pred_fallthru
          _
        %s224 = sand.u32 %s30, 1
        %s225 = scalar_lea.sflag [#allocation4], %s224
        %s226 = sand.u32 %s30, 1
        %s227 = smul.addr %s226, 96
        %s228 = scalar_lea.vmem [#allocation3], %s227
        %p229 = pneg %p43
        %p230 = pneg %p40
        %p231 = pneg %p64
        %p232 = pneg %p61
        %p233 = pneg %p85
        %p234 = pneg %p82
        %p235 = pneg %p106
        %p236 = pneg %p103
        %p237 = pneg %p132
        %p238 = pneg %p129
        %s239 = sand.u32 %s119, 1
        %s240 = scalar_lea.sflag [#allocation5], %s239
        %s241 = sand.u32 %s119, 1
        %s242 = smul.addr %s241, 32
        %s243 = scalar_lea.vmem [#allocation9], %s242
        %s244 = smul.u32 4, %s22
        %s245 = smul.u32 4, %s22
        %p246 = scmp.eq.s32.totalorder %s22, 0
        // Predicated region
        $region49: #{tpu_custom_call.1} parent=35 // pred_check
          %p247 = pneg %p246
        $region50: #{tpu_custom_call.1} parent=35 // pred_check_branch
          %249 = sbr.rel (%p247) target = $region52
        $region51: #{tpu_custom_call.1} parent=35 // pred_region
          %v250 = vld [vmem:[%s3] sm:$0xff]
          %251 = vst [vmem:[#allocation2] sm:$0xff] %v250
        $region52: #{tpu_custom_call.1} parent=35 // pred_fallthru
          _
        %v252 = vlaneseq
        %v253 = vand.u32 %v252, 127
        %vm254 = vcmp.lt.s32.totalorder %v253, 32
        %v255 = vld [vmem:[#allocation2] sm:$0xff]
        %v256 = vld [vmem:[#allocation6] sm:$0xff]
        %v257 = vld [vmem:[#allocation6 + $0x8] sm:$0xff]
        %v258 = vld [vmem:[#allocation6 + $0x10] sm:$0xff]
        %v259 = vld [vmem:[#allocation6 + $0x18] sm:$0xff]
        %v260 = vld [vmem:[#allocation6 + $0x20] sm:$0xff]
        %v261 = vld [vmem:[#allocation6 + $0x28] sm:$0xff]
        %v262 = vld [vmem:[#allocation6 + $0x30] sm:$0xff]
        %v263 = vld [vmem:[#allocation6 + $0x38] sm:$0xff]
        %v264 = vld [vmem:[#allocation6 + $0x40] sm:$0xff]
        %v265 = vld [vmem:[#allocation6 + $0x48] sm:$0xff]
        %v266 = vld [vmem:[#allocation6 + $0x50] sm:$0xff]
        %v267 = vld [vmem:[#allocation6 + $0x58] sm:$0xff]
        %v268 = vld [vmem:[#allocation6 + $0x60] sm:$0xff]
        %v269 = vld [vmem:[#allocation6 + $0x68] sm:$0xff]
        %v270 = vld [vmem:[#allocation6 + $0x70] sm:$0xff]
        %v271 = vld [vmem:[#allocation6 + $0x78] sm:$0xff]
        %v272 = vld [vmem:[#allocation6 + $0x80] sm:$0xff]
        %v273 = vld [vmem:[#allocation6 + $0x88] sm:$0xff]
        %v274 = vld [vmem:[#allocation6 + $0x90] sm:$0xff]
        %v275 = vld [vmem:[#allocation6 + $0x98] sm:$0xff]
        %v276 = vld [vmem:[#allocation6 + $0xa0] sm:$0xff]
        %v277 = vld [vmem:[#allocation6 + $0xa8] sm:$0xff]
        %v278 = vld [vmem:[#allocation6 + $0xb0] sm:$0xff]
        %v279 = vld [vmem:[#allocation6 + $0xb8] sm:$0xff]
        %v280 = vld [vmem:[#allocation6 + $0xc0] sm:$0xff]
        %v281 = vld [vmem:[#allocation6 + $0xc8] sm:$0xff]
        %v282 = vld [vmem:[#allocation6 + $0xd0] sm:$0xff]
        %v283 = vld [vmem:[#allocation6 + $0xd8] sm:$0xff]
        %v284 = vld [vmem:[#allocation6 + $0xe0] sm:$0xff]
        %v285 = vld [vmem:[#allocation6 + $0xe8] sm:$0xff]
        %v286 = vld [vmem:[#allocation6 + $0xf0] sm:$0xff]
        %v287 = vld [vmem:[#allocation6 + $0xf8] sm:$0xff]
        %v288 = vld [vmem:[#allocation6 + $0x100] sm:$0xff]
        %v289 = vld [vmem:[#allocation6 + $0x108] sm:$0xff]
        %v290 = vld [vmem:[#allocation6 + $0x110] sm:$0xff]
        %v291 = vld [vmem:[#allocation6 + $0x118] sm:$0xff]
        %v292 = vld [vmem:[#allocation6 + $0x120] sm:$0xff]
        %v293 = vld [vmem:[#allocation6 + $0x128] sm:$0xff]
        %v294 = vld [vmem:[#allocation6 + $0x130] sm:$0xff]
        %v295 = vld [vmem:[#allocation6 + $0x138] sm:$0xff]
        %v296 = vld [vmem:[#allocation6 + $0x140] sm:$0xff]
        %v297 = vld [vmem:[#allocation6 + $0x148] sm:$0xff]
        %v298 = vld [vmem:[#allocation6 + $0x150] sm:$0xff]
        %v299 = vld [vmem:[#allocation6 + $0x158] sm:$0xff]
        %v300 = vld [vmem:[#allocation6 + $0x160] sm:$0xff]
        %v301 = vld [vmem:[#allocation6 + $0x168] sm:$0xff]
        %v302 = vld [vmem:[#allocation6 + $0x170] sm:$0xff]
        %v303 = vld [vmem:[#allocation6 + $0x178] sm:$0xff]
        %304 = vmatprep.subr.mxu0 %v257
        %305 = vmatpush1.msra.mxu0 %v256
        %306 = vmatprep.subr.mxu0 %v260
        %307 = vmatpush1.msra.mxu0 %v259
        %308 = vmatprep.subr.mxu0 %v263
        %309 = vmatpush1.msra.mxu0 %v262
        %310 = vmatprep.subr.mxu0 %v266
        %311 = vmatpush1.msra.mxu0 %v265
        %312 = vmatprep.subr.mxu0 %v269
        %313 = vmatpush1.msra.mxu0 %v268
        %314 = vmatprep.subr.mxu0 %v272
        %315 = vmatpush1.msra.mxu0 %v271
        %316 = vmatprep.subr.mxu0 %v275
        %317 = vmatpush1.msra.mxu0 %v274
        %318 = vmatprep.subr.mxu0 %v278
        %319 = vmatpush1.msra.mxu0 %v277
        %320 = vmatprep.subr.mxu0 %v281
        %321 = vmatpush1.msra.mxu0 %v280
        %322 = vmatprep.subr.mxu0 %v284
        %323 = vmatpush1.msra.mxu0 %v283
        %324 = vmatprep.subr.mxu0 %v287
        %325 = vmatpush1.msra.mxu0 %v286
        %326 = vmatprep.subr.mxu0 %v290
        %327 = vmatpush1.msra.mxu0 %v289
        %328 = vmatprep.subr.mxu0 %v293
        %329 = vmatpush1.msra.mxu0 %v292
        %330 = vmatprep.subr.mxu0 %v296
        %331 = vmatpush1.msra.mxu0 %v295
        %332 = vmatprep.subr.mxu0 %v299
        %333 = vmatpush1.msra.mxu0 %v298
        %334 = vmatprep.subr.mxu0 %v302
        %335 = vmatpush1.msra.mxu0 %v301
        %336 = vmatprep.subr.mxu0 0.0
        %337 = vmatpush1.msra.mxu0 0.0
        %338 = vmatprep.subr.mxu0 0.0
        %339 = vmatpush1.msra.mxu0 0.0
        %340 = vmatprep.subr.mxu0 0.0
        %341 = vmatpush1.msra.mxu0 0.0
        %342 = vmatprep.subr.mxu0 0.0
        %343 = vmatpush1.msra.mxu0 0.0
        %344 = vmatprep.subr.mxu0 0.0
        %345 = vmatpush1.msra.mxu0 0.0
        %346 = vmatprep.subr.mxu0 0.0
        %347 = vmatpush1.msra.mxu0 0.0
        %348 = vmatprep.subr.mxu0 0.0
        %349 = vmatpush1.msra.mxu0 0.0
        %350 = vmatprep.subr.mxu0 0.0
        %351 = vmatpush1.msra.mxu0 0.0
        %352 = vmatprep.subr.mxu0 0.0
        %353 = vmatpush1.msra.mxu0 0.0
        %354 = vmatprep.subr.mxu0 0.0
        %355 = vmatpush1.msra.mxu0 0.0
        %356 = vmatprep.subr.mxu0 0.0
        %357 = vmatpush1.msra.mxu0 0.0
        %358 = vmatprep.subr.mxu0 0.0
        %359 = vmatpush1.msra.mxu0 0.0
        %360 = vmatprep.subr.mxu0 0.0
        %361 = vmatpush1.msra.mxu0 0.0
        %362 = vmatprep.subr.mxu0 0.0
        %363 = vmatpush1.msra.mxu0 0.0
        %364 = vmatprep.subr.mxu0 0.0
        %365 = vmatpush1.msra.mxu0 0.0
        %366 = vmatprep.subr.mxu0 0.0
        %367 = vmatpush1.msra.mxu0 0.0
        %368 = vmatprep.mubr.f32.mxu0 0.0
        %369 = vmatmul.mubr.f32.gmra.mrb[0].mxu0 %v255
        %v370 = vpop.f32.mrb[0].mxu0
        %v371 = vadd.f32 0.0, %v370
        %v372 = vpop.f32.mrb[0].mxu0
        %v373 = vadd.f32 0.0, %v372
        %374 = vdwg.mxu0
        %375 = vmatprep.subr.mxu0 0.0
        %376 = vmatpush1.msra.mxu0 %v258
        %377 = vmatprep.subr.mxu0 0.0
        %378 = vmatpush1.msra.mxu0 %v261
        %379 = vmatprep.subr.mxu0 0.0
        %380 = vmatpush1.msra.mxu0 %v264
        %381 = vmatprep.subr.mxu0 0.0
        %382 = vmatpush1.msra.mxu0 %v267
        %383 = vmatprep.subr.mxu0 0.0
        %384 = vmatpush1.msra.mxu0 %v270
        %385 = vmatprep.subr.mxu0 0.0
        %386 = vmatpush1.msra.mxu0 %v273
        %387 = vmatprep.subr.mxu0 0.0
        %388 = vmatpush1.msra.mxu0 %v276
        %389 = vmatprep.subr.mxu0 0.0
        %390 = vmatpush1.msra.mxu0 %v279
        %391 = vmatprep.subr.mxu0 0.0
        %392 = vmatpush1.msra.mxu0 %v282
        %393 = vmatprep.subr.mxu0 0.0
        %394 = vmatpush1.msra.mxu0 %v285
        %395 = vmatprep.subr.mxu0 0.0
        %396 = vmatpush1.msra.mxu0 %v288
        %397 = vmatprep.subr.mxu0 0.0
        %398 = vmatpush1.msra.mxu0 %v291
        %399 = vmatprep.subr.mxu0 0.0
        %400 = vmatpush1.msra.mxu0 %v294
        %401 = vmatprep.subr.mxu0 0.0
        %402 = vmatpush1.msra.mxu0 %v297
        %403 = vmatprep.subr.mxu0 0.0
        %404 = vmatpush1.msra.mxu0 %v300
        %405 = vmatprep.subr.mxu0 0.0
        %406 = vmatpush1.msra.mxu0 %v303
        %407 = vmatprep.subr.mxu0 0.0
        %408 = vmatpush1.msra.mxu0 0.0
        %409 = vmatprep.subr.mxu0 0.0
        %410 = vmatpush1.msra.mxu0 0.0
        %411 = vmatprep.subr.mxu0 0.0
        %412 = vmatpush1.msra.mxu0 0.0
        %413 = vmatprep.subr.mxu0 0.0
        %414 = vmatpush1.msra.mxu0 0.0
        %415 = vmatprep.subr.mxu0 0.0
        %416 = vmatpush1.msra.mxu0 0.0
        %417 = vmatprep.subr.mxu0 0.0
        %418 = vmatpush1.msra.mxu0 0.0
        %419 = vmatprep.subr.mxu0 0.0
        %420 = vmatpush1.msra.mxu0 0.0
        %421 = vmatprep.subr.mxu0 0.0
        %422 = vmatpush1.msra.mxu0 0.0
        %423 = vmatprep.subr.mxu0 0.0
        %424 = vmatpush1.msra.mxu0 0.0
        %425 = vmatprep.subr.mxu0 0.0
        %426 = vmatpush1.msra.mxu0 0.0
        %427 = vmatprep.subr.mxu0 0.0
        %428 = vmatpush1.msra.mxu0 0.0
        %429 = vmatprep.subr.mxu0 0.0
        %430 = vmatpush1.msra.mxu0 0.0
        %431 = vmatprep.subr.mxu0 0.0
        %432 = vmatpush1.msra.mxu0 0.0
        %433 = vmatprep.subr.mxu0 0.0
        %434 = vmatpush1.msra.mxu0 0.0
        %435 = vmatprep.subr.mxu0 0.0
        %436 = vmatpush1.msra.mxu0 0.0
        %437 = vmatprep.subr.mxu0 0.0
        %438 = vmatpush1.msra.mxu0 0.0
        %439 = vmatprep.mubr.f32.mxu0 0.0
        %440 = vmatmul.mubr.f32.gmra.mrb[0].mxu0 %v255
        %v441 = vpop.f32.mrb[0].mxu0
        %v442 = vadd.f32 0.0, %v441
        %v443 = vpop.f32.mrb[0].mxu0
        %444 = vdwg.mxu0
        %v445 = vld [vmem:[%s211] sm:$0xff]
        %v446 = vld [vmem:[%s211 + $0x8] sm:$0xff]
        %v447 = vld [vmem:[%s211 + $0x10] sm:$0xff]
        %v448 = vadd.f32 %v445, %v371
        %v449 = vadd.f32 %v446, %v373
        %v450 = vxor.u32 %v448, 2147483648
        %v451 = vxor.u32 %v449, 2147483648
        %v452 = vmul.f32 %v450, 1.442695
        %v453 = vpow.pop %v452
        %v454 = vmul.f32 %v451, 1.442695
        %v455 = vpow.pop %v454
        %v456 = vadd.f32 %v453, 1.0
        %v457 = vadd.f32 %v455, 1.0
        %v458 = vrcp.pop %v456
        %v459 = vmul.f32 1.0, %v458
        %v460 = vrcp.pop %v457
        %v461 = vmul.f32 1.0, %v460
        %v462 = vld [vmem:[#allocation8] sm:$0xff]
        %v463 = vadd.f32 %v442, %v462
        %v464 = vmul.f32 %v459, %v463
        %v465 = vadd.f32 %v447, %v464
        %v466 = vtanh.pop %v465
        %v467 = vsub.f32 1.0, %v461
        %v468 = vmul.f32 %v467, %v466
        %v469 = vmul.f32 %v461, %v255
        %v470 = vadd.f32 %v468, %v469
        %471 = vst [vmem:[%s243] sm:$0xff] %v470
        %v472 = vsel %vm254, %v470, %v255
        %473 = vst [vmem:[#allocation2] sm:$0xff] %v472
        %v474 = vld [vmem:[#allocation2] sm:$0xff]
        %v475 = vld [vmem:[#allocation6] sm:$0xff]
        %v476 = vld [vmem:[#allocation6 + $0x8] sm:$0xff]
        %v477 = vld [vmem:[#allocation6 + $0x10] sm:$0xff]
        %v478 = vld [vmem:[#allocation6 + $0x18] sm:$0xff]
        %v479 = vld [vmem:[#allocation6 + $0x20] sm:$0xff]
        %v480 = vld [vmem:[#allocation6 + $0x28] sm:$0xff]
        %v481 = vld [vmem:[#allocation6 + $0x30] sm:$0xff]
        %v482 = vld [vmem:[#allocation6 + $0x38] sm:$0xff]
        %v483 = vld [vmem:[#allocation6 + $0x40] sm:$0xff]
        %v484 = vld [vmem:[#allocation6 + $0x48] sm:$0xff]
        %v485 = vld [vmem:[#allocation6 + $0x50] sm:$0xff]
        %v486 = vld [vmem:[#allocation6 + $0x58] sm:$0xff]
        %v487 = vld [vmem:[#allocation6 + $0x60] sm:$0xff]
        %v488 = vld [vmem:[#allocation6 + $0x68] sm:$0xff]
        %v489 = vld [vmem:[#allocation6 + $0x70] sm:$0xff]
        %v490 = vld [vmem:[#allocation6 + $0x78] sm:$0xff]
        %v491 = vld [vmem:[#allocation6 + $0x80] sm:$0xff]
        %v492 = vld [vmem:[#allocation6 + $0x88] sm:$0xff]
        %v493 = vld [vmem:[#allocation6 + $0x90] sm:$0xff]
        %v494 = vld [vmem:[#allocation6 + $0x98] sm:$0xff]
        %v495 = vld [vmem:[#allocation6 + $0xa0] sm:$0xff]
        %v496 = vld [vmem:[#allocation6 + $0xa8] sm:$0xff]
        %v497 = vld [vmem:[#allocation6 + $0xb0] sm:$0xff]
        %v498 = vld [vmem:[#allocation6 + $0xb8] sm:$0xff]
        %v499 = vld [vmem:[#allocation6 + $0xc0] sm:$0xff]
        %v500 = vld [vmem:[#allocation6 + $0xc8] sm:$0xff]
        %v501 = vld [vmem:[#allocation6 + $0xd0] sm:$0xff]
        %v502 = vld [vmem:[#allocation6 + $0xd8] sm:$0xff]
        %v503 = vld [vmem:[#allocation6 + $0xe0] sm:$0xff]
        %v504 = vld [vmem:[#allocation6 + $0xe8] sm:$0xff]
        %v505 = vld [vmem:[#allocation6 + $0xf0] sm:$0xff]
        %v506 = vld [vmem:[#allocation6 + $0xf8] sm:$0xff]
        %v507 = vld [vmem:[#allocation6 + $0x100] sm:$0xff]
        %v508 = vld [vmem:[#allocation6 + $0x108] sm:$0xff]
        %v509 = vld [vmem:[#allocation6 + $0x110] sm:$0xff]
        %v510 = vld [vmem:[#allocation6 + $0x118] sm:$0xff]
        %v511 = vld [vmem:[#allocation6 + $0x120] sm:$0xff]
        %v512 = vld [vmem:[#allocation6 + $0x128] sm:$0xff]
        %v513 = vld [vmem:[#allocation6 + $0x130] sm:$0xff]
        %v514 = vld [vmem:[#allocation6 + $0x138] sm:$0xff]
        %v515 = vld [vmem:[#allocation6 + $0x140] sm:$0xff]
        %v516 = vld [vmem:[#allocation6 + $0x148] sm:$0xff]
        %v517 = vld [vmem:[#allocation6 + $0x150] sm:$0xff]
        %v518 = vld [vmem:[#allocation6 + $0x158] sm:$0xff]
        %v519 = vld [vmem:[#allocation6 + $0x160] sm:$0xff]
        %v520 = vld [vmem:[#allocation6 + $0x168] sm:$0xff]
        %v521 = vld [vmem:[#allocation6 + $0x170] sm:$0xff]
        %v522 = vld [vmem:[#allocation6 + $0x178] sm:$0xff]
        %523 = vmatprep.subr.mxu0 %v476
        %524 = vmatpush1.msra.mxu0 %v475
        %525 = vmatprep.subr.mxu0 %v479
        %526 = vmatpush1.msra.mxu0 %v478
        %527 = vmatprep.subr.mxu0 %v482
        %528 = vmatpush1.msra.mxu0 %v481
        %529 = vmatprep.subr.mxu0 %v485
        %530 = vmatpush1.msra.mxu0 %v484
        %531 = vmatprep.subr.mxu0 %v488
        %532 = vmatpush1.msra.mxu0 %v487
        %533 = vmatprep.subr.mxu0 %v491
        %534 = vmatpush1.msra.mxu0 %v490
        %535 = vmatprep.subr.mxu0 %v494
        %536 = vmatpush1.msra.mxu0 %v493
        %537 = vmatprep.subr.mxu0 %v497
        %538 = vmatpush1.msra.mxu0 %v496
        %539 = vmatprep.subr.mxu0 %v500
        %540 = vmatpush1.msra.mxu0 %v499
        %541 = vmatprep.subr.mxu0 %v503
        %542 = vmatpush1.msra.mxu0 %v502
        %543 = vmatprep.subr.mxu0 %v506
        %544 = vmatpush1.msra.mxu0 %v505
        %545 = vmatprep.subr.mxu0 %v509
        %546 = vmatpush1.msra.mxu0 %v508
        %547 = vmatprep.subr.mxu0 %v512
        %548 = vmatpush1.msra.mxu0 %v511
        %549 = vmatprep.subr.mxu0 %v515
        %550 = vmatpush1.msra.mxu0 %v514
        %551 = vmatprep.subr.mxu0 %v518
        %552 = vmatpush1.msra.mxu0 %v517
        %553 = vmatprep.subr.mxu0 %v521
        %554 = vmatpush1.msra.mxu0 %v520
        %555 = vmatprep.subr.mxu0 0.0
        %556 = vmatpush1.msra.mxu0 0.0
        %557 = vmatprep.subr.mxu0 0.0
        %558 = vmatpush1.msra.mxu0 0.0
        %559 = vmatprep.subr.mxu0 0.0
        %560 = vmatpush1.msra.mxu0 0.0
        %561 = vmatprep.subr.mxu0 0.0
        %562 = vmatpush1.msra.mxu0 0.0
        %563 = vmatprep.subr.mxu0 0.0
        %564 = vmatpush1.msra.mxu0 0.0
        %565 = vmatprep.subr.mxu0 0.0
        %566 = vmatpush1.msra.mxu0 0.0
        %567 = vmatprep.subr.mxu0 0.0
        %568 = vmatpush1.msra.mxu0 0.0
        %569 = vmatprep.subr.mxu0 0.0
        %570 = vmatpush1.msra.mxu0 0.0
        %571 = vmatprep.subr.mxu0 0.0
        %572 = vmatpush1.msra.mxu0 0.0
        %573 = vmatprep.subr.mxu0 0.0
        %574 = vmatpush1.msra.mxu0 0.0
        %575 = vmatprep.subr.mxu0 0.0
        %576 = vmatpush1.msra.mxu0 0.0
        %577 = vmatprep.subr.mxu0 0.0
        %578 = vmatpush1.msra.mxu0 0.0
        %579 = vmatprep.subr.mxu0 0.0
        %580 = vmatpush1.msra.mxu0 0.0
        %581 = vmatprep.subr.mxu0 0.0
        %582 = vmatpush1.msra.mxu0 0.0
        %583 = vmatprep.subr.mxu0 0.0
        %584 = vmatpush1.msra.mxu0 0.0
        %585 = vmatprep.subr.mxu0 0.0
        %586 = vmatpush1.msra.mxu0 0.0
        %587 = vmatprep.mubr.f32.mxu0 0.0
        %588 = vmatmul.mubr.f32.gmra.mrb[0].mxu0 %v474
        %v589 = vpop.f32.mrb[0].mxu0
        %v590 = vadd.f32 0.0, %v589
        %v591 = vpop.f32.mrb[0].mxu0
        %v592 = vadd.f32 0.0, %v591
        %593 = vdwg.mxu0
        %594 = vmatprep.subr.mxu0 0.0
        %595 = vmatpush1.msra.mxu0 %v477
        %596 = vmatprep.subr.mxu0 0.0
        %597 = vmatpush1.msra.mxu0 %v480
        %598 = vmatprep.subr.mxu0 0.0
        %599 = vmatpush1.msra.mxu0 %v483
        %600 = vmatprep.subr.mxu0 0.0
        %601 = vmatpush1.msra.mxu0 %v486
        %602 = vmatprep.subr.mxu0 0.0
        %603 = vmatpush1.msra.mxu0 %v489
        %604 = vmatprep.subr.mxu0 0.0
        %605 = vmatpush1.msra.mxu0 %v492
        %606 = vmatprep.subr.mxu0 0.0
        %607 = vmatpush1.msra.mxu0 %v495
        %608 = vmatprep.subr.mxu0 0.0
        %609 = vmatpush1.msra.mxu0 %v498
        %610 = vmatprep.subr.mxu0 0.0
        %611 = vmatpush1.msra.mxu0 %v501
        %612 = vmatprep.subr.mxu0 0.0
        %613 = vmatpush1.msra.mxu0 %v504
        %614 = vmatprep.subr.mxu0 0.0
        %615 = vmatpush1.msra.mxu0 %v507
        %616 = vmatprep.subr.mxu0 0.0
        %617 = vmatpush1.msra.mxu0 %v510
        %618 = vmatprep.subr.mxu0 0.0
        %619 = vmatpush1.msra.mxu0 %v513
        %620 = vmatprep.subr.mxu0 0.0
        %621 = vmatpush1.msra.mxu0 %v516
        %622 = vmatprep.subr.mxu0 0.0
        %623 = vmatpush1.msra.mxu0 %v519
        %624 = vmatprep.subr.mxu0 0.0
        %625 = vmatpush1.msra.mxu0 %v522
        %626 = vmatprep.subr.mxu0 0.0
        %627 = vmatpush1.msra.mxu0 0.0
        %628 = vmatprep.subr.mxu0 0.0
        %629 = vmatpush1.msra.mxu0 0.0
        %630 = vmatprep.subr.mxu0 0.0
        %631 = vmatpush1.msra.mxu0 0.0
        %632 = vmatprep.subr.mxu0 0.0
        %633 = vmatpush1.msra.mxu0 0.0
        %634 = vmatprep.subr.mxu0 0.0
        %635 = vmatpush1.msra.mxu0 0.0
        %636 = vmatprep.subr.mxu0 0.0
        %637 = vmatpush1.msra.mxu0 0.0
        %638 = vmatprep.subr.mxu0 0.0
        %639 = vmatpush1.msra.mxu0 0.0
        %640 = vmatprep.subr.mxu0 0.0
        %641 = vmatpush1.msra.mxu0 0.0
        %642 = vmatprep.subr.mxu0 0.0
        %643 = vmatpush1.msra.mxu0 0.0
        %644 = vmatprep.subr.mxu0 0.0
        %645 = vmatpush1.msra.mxu0 0.0
        %646 = vmatprep.subr.mxu0 0.0
        %647 = vmatpush1.msra.mxu0 0.0
        %648 = vmatprep.subr.mxu0 0.0
        %649 = vmatpush1.msra.mxu0 0.0
        %650 = vmatprep.subr.mxu0 0.0
        %651 = vmatpush1.msra.mxu0 0.0
        %652 = vmatprep.subr.mxu0 0.0
        %653 = vmatpush1.msra.mxu0 0.0
        %654 = vmatprep.subr.mxu0 0.0
        %655 = vmatpush1.msra.mxu0 0.0
        %656 = vmatprep.subr.mxu0 0.0
        %657 = vmatpush1.msra.mxu0 0.0
        %658 = vmatprep.mubr.f32.mxu0 0.0
        %659 = vmatmul.mubr.f32.gmra.mrb[0].mxu0 %v474
        %v660 = vpop.f32.mrb[0].mxu0
        %v661 = vadd.f32 0.0, %v660
        %v662 = vpop.f32.mrb[0].mxu0
        %663 = vdwg.mxu0
        %s664 = scalar_lea.vmem %s211, 24 [#allocation3]
        %v665 = vld [vmem:[%s664] sm:$0xff]
        %v666 = vld [vmem:[%s664 + $0x8] sm:$0xff]
        %v667 = vld [vmem:[%s664 + $0x10] sm:$0xff]
        %v668 = vadd.f32 %v665, %v590
        %v669 = vadd.f32 %v666, %v592
        %v670 = vxor.u32 %v668, 2147483648
        %v671 = vxor.u32 %v669, 2147483648
        %v672 = vmul.f32 %v670, 1.442695
        %v673 = vpow.pop %v672
        %v674 = vmul.f32 %v671, 1.442695
        %v675 = vpow.pop %v674
        %v676 = vadd.f32 %v673, 1.0
        %v677 = vadd.f32 %v675, 1.0
        %v678 = vrcp.pop %v676
        %v679 = vmul.f32 1.0, %v678
        %v680 = vrcp.pop %v677
        %v681 = vmul.f32 1.0, %v680
        %v682 = vld [vmem:[#allocation8] sm:$0xff]
        %v683 = vadd.f32 %v661, %v682
        %v684 = vmul.f32 %v679, %v683
        %v685 = vadd.f32 %v667, %v684
        %v686 = vtanh.pop %v685
        %v687 = vsub.f32 1.0, %v681
        %v688 = vmul.f32 %v687, %v686
        %v689 = vmul.f32 %v681, %v474
        %v690 = vadd.f32 %v688, %v689
        %s691 = scalar_lea.vmem %s243, 8 [#allocation9]
        %692 = vst [vmem:[%s691] sm:$0xff] %v690
        %v693 = vsel %vm254, %v690, %v474
        %694 = vst [vmem:[#allocation2] sm:$0xff] %v693
        %v695 = vld [vmem:[#allocation2] sm:$0xff]
        %v696 = vld [vmem:[#allocation6] sm:$0xff]
        %v697 = vld [vmem:[#allocation6 + $0x8] sm:$0xff]
        %v698 = vld [vmem:[#allocation6 + $0x10] sm:$0xff]
        %v699 = vld [vmem:[#allocation6 + $0x18] sm:$0xff]
        %v700 = vld [vmem:[#allocation6 + $0x20] sm:$0xff]
        %v701 = vld [vmem:[#allocation6 + $0x28] sm:$0xff]
        %v702 = vld [vmem:[#allocation6 + $0x30] sm:$0xff]
        %v703 = vld [vmem:[#allocation6 + $0x38] sm:$0xff]
        %v704 = vld [vmem:[#allocation6 + $0x40] sm:$0xff]
        %v705 = vld [vmem:[#allocation6 + $0x48] sm:$0xff]
        %v706 = vld [vmem:[#allocation6 + $0x50] sm:$0xff]
        %v707 = vld [vmem:[#allocation6 + $0x58] sm:$0xff]
        %v708 = vld [vmem:[#allocation6 + $0x60] sm:$0xff]
        %v709 = vld [vmem:[#allocation6 + $0x68] sm:$0xff]
        %v710 = vld [vmem:[#allocation6 + $0x70] sm:$0xff]
        %v711 = vld [vmem:[#allocation6 + $0x78] sm:$0xff]
        %v712 = vld [vmem:[#allocation6 + $0x80] sm:$0xff]
        %v713 = vld [vmem:[#allocation6 + $0x88] sm:$0xff]
        %v714 = vld [vmem:[#allocation6 + $0x90] sm:$0xff]
        %v715 = vld [vmem:[#allocation6 + $0x98] sm:$0xff]
        %v716 = vld [vmem:[#allocation6 + $0xa0] sm:$0xff]
        %v717 = vld [vmem:[#allocation6 + $0xa8] sm:$0xff]
        %v718 = vld [vmem:[#allocation6 + $0xb0] sm:$0xff]
        %v719 = vld [vmem:[#allocation6 + $0xb8] sm:$0xff]
        %v720 = vld [vmem:[#allocation6 + $0xc0] sm:$0xff]
        %v721 = vld [vmem:[#allocation6 + $0xc8] sm:$0xff]
        %v722 = vld [vmem:[#allocation6 + $0xd0] sm:$0xff]
        %v723 = vld [vmem:[#allocation6 + $0xd8] sm:$0xff]
        %v724 = vld [vmem:[#allocation6 + $0xe0] sm:$0xff]
        %v725 = vld [vmem:[#allocation6 + $0xe8] sm:$0xff]
        %v726 = vld [vmem:[#allocation6 + $0xf0] sm:$0xff]
        %v727 = vld [vmem:[#allocation6 + $0xf8] sm:$0xff]
        %v728 = vld [vmem:[#allocation6 + $0x100] sm:$0xff]
        %v729 = vld [vmem:[#allocation6 + $0x108] sm:$0xff]
        %v730 = vld [vmem:[#allocation6 + $0x110] sm:$0xff]
        %v731 = vld [vmem:[#allocation6 + $0x118] sm:$0xff]
        %v732 = vld [vmem:[#allocation6 + $0x120] sm:$0xff]
        %v733 = vld [vmem:[#allocation6 + $0x128] sm:$0xff]
        %v734 = vld [vmem:[#allocation6 + $0x130] sm:$0xff]
        %v735 = vld [vmem:[#allocation6 + $0x138] sm:$0xff]
        %v736 = vld [vmem:[#allocation6 + $0x140] sm:$0xff]
        %v737 = vld [vmem:[#allocation6 + $0x148] sm:$0xff]
        %v738 = vld [vmem:[#allocation6 + $0x150] sm:$0xff]
        %v739 = vld [vmem:[#allocation6 + $0x158] sm:$0xff]
        %v740 = vld [vmem:[#allocation6 + $0x160] sm:$0xff]
        %v741 = vld [vmem:[#allocation6 + $0x168] sm:$0xff]
        %v742 = vld [vmem:[#allocation6 + $0x170] sm:$0xff]
        %v743 = vld [vmem:[#allocation6 + $0x178] sm:$0xff]
        %744 = vmatprep.subr.mxu0 %v697
        %745 = vmatpush1.msra.mxu0 %v696
        %746 = vmatprep.subr.mxu0 %v700
        %747 = vmatpush1.msra.mxu0 %v699
        %748 = vmatprep.subr.mxu0 %v703
        %749 = vmatpush1.msra.mxu0 %v702
        %750 = vmatprep.subr.mxu0 %v706
        %751 = vmatpush1.msra.mxu0 %v705
        %752 = vmatprep.subr.mxu0 %v709
        %753 = vmatpush1.msra.mxu0 %v708
        %754 = vmatprep.subr.mxu0 %v712
        %755 = vmatpush1.msra.mxu0 %v711
        %756 = vmatprep.subr.mxu0 %v715
        %757 = vmatpush1.msra.mxu0 %v714
        %758 = vmatprep.subr.mxu0 %v718
        %759 = vmatpush1.msra.mxu0 %v717
        %760 = vmatprep.subr.mxu0 %v721
        %761 = vmatpush1.msra.mxu0 %v720
        %762 = vmatprep.subr.mxu0 %v724
        %763 = vmatpush1.msra.mxu0 %v723
        %764 = vmatprep.subr.mxu0 %v727
        %765 = vmatpush1.msra.mxu0 %v726
        %766 = vmatprep.subr.mxu0 %v730
        %767 = vmatpush1.msra.mxu0 %v729
        %768 = vmatprep.subr.mxu0 %v733
        %769 = vmatpush1.msra.mxu0 %v732
        %770 = vmatprep.subr.mxu0 %v736
        %771 = vmatpush1.msra.mxu0 %v735
        %772 = vmatprep.subr.mxu0 %v739
        %773 = vmatpush1.msra.mxu0 %v738
        %774 = vmatprep.subr.mxu0 %v742
        %775 = vmatpush1.msra.mxu0 %v741
        %776 = vmatprep.subr.mxu0 0.0
        %777 = vmatpush1.msra.mxu0 0.0
        %778 = vmatprep.subr.mxu0 0.0
        %779 = vmatpush1.msra.mxu0 0.0
        %780 = vmatprep.subr.mxu0 0.0
        %781 = vmatpush1.msra.mxu0 0.0
        %782 = vmatprep.subr.mxu0 0.0
        %783 = vmatpush1.msra.mxu0 0.0
        %784 = vmatprep.subr.mxu0 0.0
        %785 = vmatpush1.msra.mxu0 0.0
        %786 = vmatprep.subr.mxu0 0.0
        %787 = vmatpush1.msra.mxu0 0.0
        %788 = vmatprep.subr.mxu0 0.0
        %789 = vmatpush1.msra.mxu0 0.0
        %790 = vmatprep.subr.mxu0 0.0
        %791 = vmatpush1.msra.mxu0 0.0
        %792 = vmatprep.subr.mxu0 0.0
        %793 = vmatpush1.msra.mxu0 0.0
        %794 = vmatprep.subr.mxu0 0.0
        %795 = vmatpush1.msra.mxu0 0.0
        %796 = vmatprep.subr.mxu0 0.0
        %797 = vmatpush1.msra.mxu0 0.0
        %798 = vmatprep.subr.mxu0 0.0
        %799 = vmatpush1.msra.mxu0 0.0
        %800 = vmatprep.subr.mxu0 0.0
        %801 = vmatpush1.msra.mxu0 0.0
        %802 = vmatprep.subr.mxu0 0.0
        %803 = vmatpush1.msra.mxu0 0.0
        %804 = vmatprep.subr.mxu0 0.0
        %805 = vmatpush1.msra.mxu0 0.0
        %806 = vmatprep.subr.mxu0 0.0
        %807 = vmatpush1.msra.mxu0 0.0
        %808 = vmatprep.mubr.f32.mxu0 0.0
        %809 = vmatmul.mubr.f32.gmra.mrb[0].mxu0 %v695
        %v810 = vpop.f32.mrb[0].mxu0
        %v811 = vadd.f32 0.0, %v810
        %v812 = vpop.f32.mrb[0].mxu0
        %v813 = vadd.f32 0.0, %v812
        %814 = vdwg.mxu0
        %815 = vmatprep.subr.mxu0 0.0
        %816 = vmatpush1.msra.mxu0 %v698
        %817 = vmatprep.subr.mxu0 0.0
        %818 = vmatpush1.msra.mxu0 %v701
        %819 = vmatprep.subr.mxu0 0.0
        %820 = vmatpush1.msra.mxu0 %v704
        %821 = vmatprep.subr.mxu0 0.0
        %822 = vmatpush1.msra.mxu0 %v707
        %823 = vmatprep.subr.mxu0 0.0
        %824 = vmatpush1.msra.mxu0 %v710
        %825 = vmatprep.subr.mxu0 0.0
        %826 = vmatpush1.msra.mxu0 %v713
        %827 = vmatprep.subr.mxu0 0.0
        %828 = vmatpush1.msra.mxu0 %v716
        %829 = vmatprep.subr.mxu0 0.0
        %830 = vmatpush1.msra.mxu0 %v719
        %831 = vmatprep.subr.mxu0 0.0
        %832 = vmatpush1.msra.mxu0 %v722
        %833 = vmatprep.subr.mxu0 0.0
        %834 = vmatpush1.msra.mxu0 %v725
        %835 = vmatprep.subr.mxu0 0.0
        %836 = vmatpush1.msra.mxu0 %v728
        %837 = vmatprep.subr.mxu0 0.0
        %838 = vmatpush1.msra.mxu0 %v731
        %839 = vmatprep.subr.mxu0 0.0
        %840 = vmatpush1.msra.mxu0 %v734
        %841 = vmatprep.subr.mxu0 0.0
        %842 = vmatpush1.msra.mxu0 %v737
        %843 = vmatprep.subr.mxu0 0.0
        %844 = vmatpush1.msra.mxu0 %v740
        %845 = vmatprep.subr.mxu0 0.0
        %846 = vmatpush1.msra.mxu0 %v743
        %847 = vmatprep.subr.mxu0 0.0
        %848 = vmatpush1.msra.mxu0 0.0
        %849 = vmatprep.subr.mxu0 0.0
        %850 = vmatpush1.msra.mxu0 0.0
        %851 = vmatprep.subr.mxu0 0.0
        %852 = vmatpush1.msra.mxu0 0.0
        %853 = vmatprep.subr.mxu0 0.0
        %854 = vmatpush1.msra.mxu0 0.0
        %855 = vmatprep.subr.mxu0 0.0
        %856 = vmatpush1.msra.mxu0 0.0
        %857 = vmatprep.subr.mxu0 0.0
        %858 = vmatpush1.msra.mxu0 0.0
        %859 = vmatprep.subr.mxu0 0.0
        %860 = vmatpush1.msra.mxu0 0.0
        %861 = vmatprep.subr.mxu0 0.0
        %862 = vmatpush1.msra.mxu0 0.0
        %863 = vmatprep.subr.mxu0 0.0
        %864 = vmatpush1.msra.mxu0 0.0
        %865 = vmatprep.subr.mxu0 0.0
        %866 = vmatpush1.msra.mxu0 0.0
        %867 = vmatprep.subr.mxu0 0.0
        %868 = vmatpush1.msra.mxu0 0.0
        %869 = vmatprep.subr.mxu0 0.0
        %870 = vmatpush1.msra.mxu0 0.0
        %871 = vmatprep.subr.mxu0 0.0
        %872 = vmatpush1.msra.mxu0 0.0
        %873 = vmatprep.subr.mxu0 0.0
        %874 = vmatpush1.msra.mxu0 0.0
        %875 = vmatprep.subr.mxu0 0.0
        %876 = vmatpush1.msra.mxu0 0.0
        %877 = vmatprep.subr.mxu0 0.0
        %878 = vmatpush1.msra.mxu0 0.0
        %879 = vmatprep.mubr.f32.mxu0 0.0
        %880 = vmatmul.mubr.f32.gmra.mrb[0].mxu0 %v695
        %v881 = vpop.f32.mrb[0].mxu0
        %v882 = vadd.f32 0.0, %v881
        %v883 = vpop.f32.mrb[0].mxu0
        %884 = vdwg.mxu0
        %s885 = scalar_lea.vmem %s211, 48 [#allocation3]
        %v886 = vld [vmem:[%s885] sm:$0xff]
        %v887 = vld [vmem:[%s885 + $0x8] sm:$0xff]
        %v888 = vld [vmem:[%s885 + $0x10] sm:$0xff]
        %v889 = vadd.f32 %v886, %v811
        %v890 = vadd.f32 %v887, %v813
        %v891 = vxor.u32 %v889, 2147483648
        %v892 = vxor.u32 %v890, 2147483648
        %v893 = vmul.f32 %v891, 1.442695
        %v894 = vpow.pop %v893
        %v895 = vmul.f32 %v892, 1.442695
        %v896 = vpow.pop %v895
        %v897 = vadd.f32 %v894, 1.0
        %v898 = vadd.f32 %v896, 1.0
        %v899 = vrcp.pop %v897
        %v900 = vmul.f32 1.0, %v899
        %v901 = vrcp.pop %v898
        %v902 = vmul.f32 1.0, %v901
        %v903 = vld [vmem:[#allocation8] sm:$0xff]
        %v904 = vadd.f32 %v882, %v903
        %v905 = vmul.f32 %v900, %v904
        %v906 = vadd.f32 %v888, %v905
        %v907 = vtanh.pop %v906
        %v908 = vsub.f32 1.0, %v902
        %v909 = vmul.f32 %v908, %v907
        %v910 = vmul.f32 %v902, %v695
        %v911 = vadd.f32 %v909, %v910
        %s912 = scalar_lea.vmem %s243, 16 [#allocation9]
        %913 = vst [vmem:[%s912] sm:$0xff] %v911
        %v914 = vsel %vm254, %v911, %v695
        %915 = vst [vmem:[#allocation2] sm:$0xff] %v914
        %v916 = vld [vmem:[#allocation2] sm:$0xff]
        %v917 = vld [vmem:[#allocation6] sm:$0xff]
        %v918 = vld [vmem:[#allocation6 + $0x8] sm:$0xff]
        %v919 = vld [vmem:[#allocation6 + $0x10] sm:$0xff]
        %v920 = vld [vmem:[#allocation6 + $0x18] sm:$0xff]
        %v921 = vld [vmem:[#allocation6 + $0x20] sm:$0xff]
        %v922 = vld [vmem:[#allocation6 + $0x28] sm:$0xff]
        %v923 = vld [vmem:[#allocation6 + $0x30] sm:$0xff]
        %v924 = vld [vmem:[#allocation6 + $0x38] sm:$0xff]
        %v925 = vld [vmem:[#allocation6 + $0x40] sm:$0xff]
        %v926 = vld [vmem:[#allocation6 + $0x48] sm:$0xff]
        %v927 = vld [vmem:[#allocation6 + $0x50] sm:$0xff]
        %v928 = vld [vmem:[#allocation6 + $0x58] sm:$0xff]
        %v929 = vld [vmem:[#allocation6 + $0x60] sm:$0xff]
        %v930 = vld [vmem:[#allocation6 + $0x68] sm:$0xff]
        %v931 = vld [vmem:[#allocation6 + $0x70] sm:$0xff]
        %v932 = vld [vmem:[#allocation6 + $0x78] sm:$0xff]
        %v933 = vld [vmem:[#allocation6 + $0x80] sm:$0xff]
        %v934 = vld [vmem:[#allocation6 + $0x88] sm:$0xff]
        %v935 = vld [vmem:[#allocation6 + $0x90] sm:$0xff]
        %v936 = vld [vmem:[#allocation6 + $0x98] sm:$0xff]
        %v937 = vld [vmem:[#allocation6 + $0xa0] sm:$0xff]
        %v938 = vld [vmem:[#allocation6 + $0xa8] sm:$0xff]
        %v939 = vld [vmem:[#allocation6 + $0xb0] sm:$0xff]
        %v940 = vld [vmem:[#allocation6 + $0xb8] sm:$0xff]
        %v941 = vld [vmem:[#allocation6 + $0xc0] sm:$0xff]
        %v942 = vld [vmem:[#allocation6 + $0xc8] sm:$0xff]
        %v943 = vld [vmem:[#allocation6 + $0xd0] sm:$0xff]
        %v944 = vld [vmem:[#allocation6 + $0xd8] sm:$0xff]
        %v945 = vld [vmem:[#allocation6 + $0xe0] sm:$0xff]
        %v946 = vld [vmem:[#allocation6 + $0xe8] sm:$0xff]
        %v947 = vld [vmem:[#allocation6 + $0xf0] sm:$0xff]
        %v948 = vld [vmem:[#allocation6 + $0xf8] sm:$0xff]
        %v949 = vld [vmem:[#allocation6 + $0x100] sm:$0xff]
        %v950 = vld [vmem:[#allocation6 + $0x108] sm:$0xff]
        %v951 = vld [vmem:[#allocation6 + $0x110] sm:$0xff]
        %v952 = vld [vmem:[#allocation6 + $0x118] sm:$0xff]
        %v953 = vld [vmem:[#allocation6 + $0x120] sm:$0xff]
        %v954 = vld [vmem:[#allocation6 + $0x128] sm:$0xff]
        %v955 = vld [vmem:[#allocation6 + $0x130] sm:$0xff]
        %v956 = vld [vmem:[#allocation6 + $0x138] sm:$0xff]
        %v957 = vld [vmem:[#allocation6 + $0x140] sm:$0xff]
        %v958 = vld [vmem:[#allocation6 + $0x148] sm:$0xff]
        %v959 = vld [vmem:[#allocation6 + $0x150] sm:$0xff]
        %v960 = vld [vmem:[#allocation6 + $0x158] sm:$0xff]
        %v961 = vld [vmem:[#allocation6 + $0x160] sm:$0xff]
        %v962 = vld [vmem:[#allocation6 + $0x168] sm:$0xff]
        %v963 = vld [vmem:[#allocation6 + $0x170] sm:$0xff]
        %v964 = vld [vmem:[#allocation6 + $0x178] sm:$0xff]
        %965 = vmatprep.subr.mxu0 %v918
        %966 = vmatpush1.msra.mxu0 %v917
        %967 = vmatprep.subr.mxu0 %v921
        %968 = vmatpush1.msra.mxu0 %v920
        %969 = vmatprep.subr.mxu0 %v924
        %970 = vmatpush1.msra.mxu0 %v923
        %971 = vmatprep.subr.mxu0 %v927
        %972 = vmatpush1.msra.mxu0 %v926
        %973 = vmatprep.subr.mxu0 %v930
        %974 = vmatpush1.msra.mxu0 %v929
        %975 = vmatprep.subr.mxu0 %v933
        %976 = vmatpush1.msra.mxu0 %v932
        %977 = vmatprep.subr.mxu0 %v936
        %978 = vmatpush1.msra.mxu0 %v935
        %979 = vmatprep.subr.mxu0 %v939
        %980 = vmatpush1.msra.mxu0 %v938
        %981 = vmatprep.subr.mxu0 %v942
        %982 = vmatpush1.msra.mxu0 %v941
        %983 = vmatprep.subr.mxu0 %v945
        %984 = vmatpush1.msra.mxu0 %v944
        %985 = vmatprep.subr.mxu0 %v948
        %986 = vmatpush1.msra.mxu0 %v947
        %987 = vmatprep.subr.mxu0 %v951
        %988 = vmatpush1.msra.mxu0 %v950
        %989 = vmatprep.subr.mxu0 %v954
        %990 = vmatpush1.msra.mxu0 %v953
        %991 = vmatprep.subr.mxu0 %v957
        %992 = vmatpush1.msra.mxu0 %v956
        %993 = vmatprep.subr.mxu0 %v960
        %994 = vmatpush1.msra.mxu0 %v959
        %995 = vmatprep.subr.mxu0 %v963
        %996 = vmatpush1.msra.mxu0 %v962
        %997 = vmatprep.subr.mxu0 0.0
        %998 = vmatpush1.msra.mxu0 0.0
        %999 = vmatprep.subr.mxu0 0.0
        %1000 = vmatpush1.msra.mxu0 0.0
        %1001 = vmatprep.subr.mxu0 0.0
        %1002 = vmatpush1.msra.mxu0 0.0
        %1003 = vmatprep.subr.mxu0 0.0
        %1004 = vmatpush1.msra.mxu0 0.0
        %1005 = vmatprep.subr.mxu0 0.0
        %1006 = vmatpush1.msra.mxu0 0.0
        %1007 = vmatprep.subr.mxu0 0.0
        %1008 = vmatpush1.msra.mxu0 0.0
        %1009 = vmatprep.subr.mxu0 0.0
        %1010 = vmatpush1.msra.mxu0 0.0
        %1011 = vmatprep.subr.mxu0 0.0
        %1012 = vmatpush1.msra.mxu0 0.0
        %1013 = vmatprep.subr.mxu0 0.0
        %1014 = vmatpush1.msra.mxu0 0.0
        %1015 = vmatprep.subr.mxu0 0.0
        %1016 = vmatpush1.msra.mxu0 0.0
        %1017 = vmatprep.subr.mxu0 0.0
        %1018 = vmatpush1.msra.mxu0 0.0
        %1019 = vmatprep.subr.mxu0 0.0
        %1020 = vmatpush1.msra.mxu0 0.0
        %1021 = vmatprep.subr.mxu0 0.0
        %1022 = vmatpush1.msra.mxu0 0.0
        %1023 = vmatprep.subr.mxu0 0.0
        %1024 = vmatpush1.msra.mxu0 0.0
        %1025 = vmatprep.subr.mxu0 0.0
        %1026 = vmatpush1.msra.mxu0 0.0
        %1027 = vmatprep.subr.mxu0 0.0
        %1028 = vmatpush1.msra.mxu0 0.0
        %1029 = vmatprep.mubr.f32.mxu0 0.0
        %1030 = vmatmul.mubr.f32.gmra.mrb[0].mxu0 %v916
        %v1031 = vpop.f32.mrb[0].mxu0
        %v1032 = vadd.f32 0.0, %v1031
        %v1033 = vpop.f32.mrb[0].mxu0
        %v1034 = vadd.f32 0.0, %v1033
        %1035 = vdwg.mxu0
        %1036 = vmatprep.subr.mxu0 0.0
        %1037 = vmatpush1.msra.mxu0 %v919
        %1038 = vmatprep.subr.mxu0 0.0
        %1039 = vmatpush1.msra.mxu0 %v922
        %1040 = vmatprep.subr.mxu0 0.0
        %1041 = vmatpush1.msra.mxu0 %v925
        %1042 = vmatprep.subr.mxu0 0.0
        %1043 = vmatpush1.msra.mxu0 %v928
        %1044 = vmatprep.subr.mxu0 0.0
        %1045 = vmatpush1.msra.mxu0 %v931
        %1046 = vmatprep.subr.mxu0 0.0
        %1047 = vmatpush1.msra.mxu0 %v934
        %1048 = vmatprep.subr.mxu0 0.0
        %1049 = vmatpush1.msra.mxu0 %v937
        %1050 = vmatprep.subr.mxu0 0.0
        %1051 = vmatpush1.msra.mxu0 %v940
        %1052 = vmatprep.subr.mxu0 0.0
        %1053 = vmatpush1.msra.mxu0 %v943
        %1054 = vmatprep.subr.mxu0 0.0
        %1055 = vmatpush1.msra.mxu0 %v946
        %1056 = vmatprep.subr.mxu0 0.0
        %1057 = vmatpush1.msra.mxu0 %v949
        %1058 = vmatprep.subr.mxu0 0.0
        %1059 = vmatpush1.msra.mxu0 %v952
        %1060 = vmatprep.subr.mxu0 0.0
        %1061 = vmatpush1.msra.mxu0 %v955
        %1062 = vmatprep.subr.mxu0 0.0
        %1063 = vmatpush1.msra.mxu0 %v958
        %1064 = vmatprep.subr.mxu0 0.0
        %1065 = vmatpush1.msra.mxu0 %v961
        %1066 = vmatprep.subr.mxu0 0.0
        %1067 = vmatpush1.msra.mxu0 %v964
        %1068 = vmatprep.subr.mxu0 0.0
        %1069 = vmatpush1.msra.mxu0 0.0
        %1070 = vmatprep.subr.mxu0 0.0
        %1071 = vmatpush1.msra.mxu0 0.0
        %1072 = vmatprep.subr.mxu0 0.0
        %1073 = vmatpush1.msra.mxu0 0.0
        %1074 = vmatprep.subr.mxu0 0.0
        %1075 = vmatpush1.msra.mxu0 0.0
        %1076 = vmatprep.subr.mxu0 0.0
        %1077 = vmatpush1.msra.mxu0 0.0
        %1078 = vmatprep.subr.mxu0 0.0
        %1079 = vmatpush1.msra.mxu0 0.0
        %1080 = vmatprep.subr.mxu0 0.0
        %1081 = vmatpush1.msra.mxu0 0.0
        %1082 = vmatprep.subr.mxu0 0.0
        %1083 = vmatpush1.msra.mxu0 0.0
        %1084 = vmatprep.subr.mxu0 0.0
        %1085 = vmatpush1.msra.mxu0 0.0
        %1086 = vmatprep.subr.mxu0 0.0
        %1087 = vmatpush1.msra.mxu0 0.0
        %1088 = vmatprep.subr.mxu0 0.0
        %1089 = vmatpush1.msra.mxu0 0.0
        %1090 = vmatprep.subr.mxu0 0.0
        %1091 = vmatpush1.msra.mxu0 0.0
        %1092 = vmatprep.subr.mxu0 0.0
        %1093 = vmatpush1.msra.mxu0 0.0
        %1094 = vmatprep.subr.mxu0 0.0
        %1095 = vmatpush1.msra.mxu0 0.0
        %1096 = vmatprep.subr.mxu0 0.0
        %1097 = vmatpush1.msra.mxu0 0.0
        %1098 = vmatprep.subr.mxu0 0.0
        %1099 = vmatpush1.msra.mxu0 0.0
        %1100 = vmatprep.mubr.f32.mxu0 0.0
        %1101 = vmatmul.mubr.f32.gmra.mrb[0].mxu0 %v916
        %v1102 = vpop.f32.mrb[0].mxu0
        %v1103 = vadd.f32 0.0, %v1102
        %v1104 = vpop.f32.mrb[0].mxu0
        %1105 = vdwg.mxu0
        %s1106 = scalar_lea.vmem %s211, 72 [#allocation3]
        %v1107 = vld [vmem:[%s1106] sm:$0xff]
        %v1108 = vld [vmem:[%s1106 + $0x8] sm:$0xff]
        %v1109 = vld [vmem:[%s1106 + $0x10] sm:$0xff]
        %v1110 = vadd.f32 %v1107, %v1032
        %v1111 = vadd.f32 %v1108, %v1034
        %v1112 = vxor.u32 %v1110, 2147483648
        %v1113 = vxor.u32 %v1111, 2147483648
        %v1114 = vmul.f32 %v1112, 1.442695
        %v1115 = vpow.pop %v1114
        %v1116 = vmul.f32 %v1113, 1.442695
        %v1117 = vpow.pop %v1116
        %v1118 = vadd.f32 %v1115, 1.0
        %v1119 = vadd.f32 %v1117, 1.0
        %v1120 = vrcp.pop %v1118
        %v1121 = vmul.f32 1.0, %v1120
        %v1122 = vrcp.pop %v1119
        %v1123 = vmul.f32 1.0, %v1122
        %v1124 = vld [vmem:[#allocation8] sm:$0xff]
        %v1125 = vadd.f32 %v1103, %v1124
        %v1126 = vmul.f32 %v1121, %v1125
        %v1127 = vadd.f32 %v1109, %v1126
        %v1128 = vtanh.pop %v1127
        %v1129 = vsub.f32 1.0, %v1123
        %v1130 = vmul.f32 %v1129, %v1128
        %v1131 = vmul.f32 %v1123, %v916
        %v1132 = vadd.f32 %v1130, %v1131
        %s1133 = scalar_lea.vmem %s243, 24 [#allocation9]
        %1134 = vst [vmem:[%s1133] sm:$0xff] %v1132
        %v1135 = vsel %vm254, %v1132, %v916
        %1136 = vst [vmem:[#allocation2] sm:$0xff] %v1135
        %s1137 = sand.u32 %s119, 1
        %s1138 = scalar_lea.sflag [#allocation5], %s1137
        %s1139 = sand.u32 %s119, 1
        %s1140 = smul.addr %s1139, 32
        %s1141 = scalar_lea.vmem [#allocation9], %s1140
        // Predicated region
        $region53: #{tpu_custom_call.1} parent=35 // pred_check
          %p1142 = pneg %p129
        $region54: #{tpu_custom_call.1} parent=35 // pred_check_branch
          %1144 = sbr.rel (%p1142) target = $region56
        $region55: #{tpu_custom_call.1} parent=35 // pred_region
          %s1145 = smul.u32 4, %s22
          %s1147 = ssub.s32 512, 512
          %1148 = vsyncadd %s1138, %s1147
          %s1149 = smul.addr %s1145, 128
          %s1150 = scalar_lea.hbm %s4, %s1149
          %s1151 = sshll.u32 %s1141, 4
          %s1152 = int_to_ptr.vmem [resolvable:$true] %s1151
          %1157 = dma.vmem_to_hbm [thread:$0]  %s1152, 512, %s1150, %s1138, 128, 128, 8
        $region56: #{tpu_custom_call.1} parent=35 // pred_fallthru
          _
      $region36: #{tpu_custom_call.1} parent=5 // pred_fallthru
        _
      %p1158 = scmp.le.s32.totalorder 2, %s17
      // Predicated region
      $region57: #{tpu_custom_call.1} parent=5 // pred_check
        %p1159 = pneg %p1158
      $region58: #{tpu_custom_call.1} parent=5 // pred_check_branch
        %1161 = sbr.rel (%p1159) target = $region60
      $region59: #{tpu_custom_call.1} parent=5 // pred_region
        %s1162 = ssub.s32 %s17, 2
        // Predicated region
        $region61: #{tpu_custom_call.1} parent=59 // pred_check
          %p1163 = pneg %p135
        $region62: #{tpu_custom_call.1} parent=59 // pred_check_branch
          %1165 = sbr.rel (%p1163) target = $region64
        $region63: #{tpu_custom_call.1} parent=59 // pred_region
          %s1166 = sand.u32 %s120, 1
          %s1167 = scalar_lea.sflag [#allocation5], %s1166
          %s1168 = sand.u32 %s120, 1
          %s1169 = smul.addr %s1168, 32
          %s1170 = scalar_lea.vmem [#allocation9], %s1169
          %1171 = dma.done %s1167, 512
        $region64: #{tpu_custom_call.1} parent=59 // pred_fallthru
          _
      $region60: #{tpu_custom_call.1} parent=5 // pred_fallthru
        _
    $region6: #{tpu_custom_call.1} parent=1 // loop_footer
      %s21 = sadd.s32 1, %s17
    $region7: #{tpu_custom_call.1} parent=1 // loop_footer_branch
      %16 = sbr.rel target = $region3
    $region8: #{tpu_custom_call.1} parent=1 // loop_exit
      _
    %1172 = vsyncpa [#allocation4], 1
    %s1173 = scalar_lea.sflag [#allocation4], 1
    %1174 = vsyncpa %s1173, 1
    %1175 = vsyncpa [#allocation7], 1
    %1176 = vsyncpa [#allocation5], 1
    %s1177 = scalar_lea.sflag [#allocation5], 1
    %1178 = vsyncpa %s1177, 1

</llo_original>
